<compile_context>
chip_gen: v7x
topology: tpu7x:2x2x1
jax: 0.10.0
libtpu: 0.0.40
codegen_flags: <defaults>
</compile_context>

<pallas_src>
import collections
import functools

import numpy as np
import jax
import jax.numpy as jnp
from jax import lax
from jax.experimental import pallas as pl
from jax.experimental.pallas import tpu as pltpu

BN_EPS = 1e-5                       # nn.BatchNorm2d default
VMEM_LIMIT = 32 * 1024 * 1024       # <= scoped budget on v5e/v6e/v7x

BlockMeta = collections.namedtuple("BlockMeta", ["fused", "stride", "has_down"])


# ---------------------------------------------------------------------------
# helpers
# ---------------------------------------------------------------------------
def _pick_tile(size, cap, step):
    """Largest t <= cap with size % t == 0 and t % step == 0, else the full size.
    (All shapes in this network divide cleanly; for production shapes pad the
    row dim up to a tile multiple instead of relying on the whole-dim fallback.)"""
    if size <= cap:
        return size
    t = (cap // step) * step
    while t >= step:
        if size % t == 0:
            return t
        t -= step
    return size


def _fold_bn(p):
    """Fold inference-mode BatchNorm into per-channel (scale, shift), shape (1, C)."""
    inv = lax.rsqrt(p["var"] + BN_EPS)
    scale = (p["gamma"] * inv)[None, :]
    shift = (p["beta"] - p["mean"] * p["gamma"] * inv)[None, :]
    return scale, shift


# ---------------------------------------------------------------------------
# Pallas kernel bodies
# ---------------------------------------------------------------------------
def _mm_affine_kernel(x_ref, w_ref, s_ref, t_ref, o_ref, *, relu):
    """o = act((x @ w) * scale + shift)  -- conv-as-matmul + folded BN (+ReLU)."""
    acc = jnp.dot(x_ref[...], w_ref[...], preferred_element_type=jnp.float32)
    y = acc * s_ref[...] + t_ref[...]
    if relu:
        y = jnp.maximum(y, 0.0)
    o_ref[...] = y.astype(o_ref.dtype)


def _mm_affine_res_kernel(x_ref, w_ref, s_ref, t_ref, r_ref, *out_refs, emit_pre):
    """pre = (x @ w) * scale + shift + residual ;  post = relu(pre).
    Only writes 'pre' to HBM when the block is a hyperpixel layer."""
    acc = jnp.dot(x_ref[...], w_ref[...], preferred_element_type=jnp.float32)
    pre = acc * s_ref[...] + t_ref[...] + r_ref[...].astype(jnp.float32)
    if emit_pre:
        out_refs[0][...] = pre.astype(out_refs[0].dtype)
        out_refs[1][...] = jnp.maximum(pre, 0.0).astype(out_refs[1].dtype)
    else:
        out_refs[0][...] = jnp.maximum(pre, 0.0).astype(out_refs[0].dtype)


def _roll_rows(y, k):
    """Circular roll along axis 0 by a static k: roll(y, k)[p] = y[(p - k) % m]."""
    if k == 0:
        return y
    return jnp.concatenate([y[-k:], y[:-k]], axis=0)


def _bottleneck_fused_kernel(x_ref, w1_ref, s1_ref, t1_ref,
                             w2_ref, s2_ref, t2_ref,
                             w3_ref, s3_ref, t3_ref,
                             *out_refs, h, w, emit_pre):
    """Whole ResNet bottleneck (stride 1, identity shortcut) in one kernel:
        y1 = relu(bn1(x @ w1))
        y2 = relu(bn2(conv3x3(y1)))        # 9 row-shifted (roll+mask) matmuls
        pre = bn3(y2 @ w3) + x ; post = relu(pre)
    Intermediates never leave VMEM; no im2col touches HBM.
    The block must hold an integer number of whole images (rows = k * h * w)
    because the 3x3 neighbourhood is realised as row shifts."""
    m = x_ref.shape[0]
    width = w1_ref.shape[1]
    mi = h * w                                    # rows per image inside the block

    x = x_ref[...]                                # bf16 (m, cin)
    y1 = jnp.dot(x, w1_ref[...], preferred_element_type=jnp.float32)
    y1 = jnp.maximum(y1 * s1_ref[...] + t1_ref[...], 0.0)

    row = lax.broadcasted_iota(jnp.int32, (m, 1), 0)
    if (mi & (mi - 1)) == 0 and (w & (w - 1)) == 0:   # power-of-two fast path
        p = row & (mi - 1)
        jj = p & (w - 1)
        ii = p >> (w.bit_length() - 1)
    else:                                              # general (slower) path
        p = row % mi
        jj = p % w
        ii = p // w

    acc = jnp.zeros((m, width), jnp.float32)
    for t in range(9):
        dy, dx = t // 3 - 1, t % 3 - 1
        off = dy * w + dx
        sh = _roll_rows(y1, (-off) % m)
        valid = (ii + dy >= 0) & (ii + dy < h) & (jj + dx >= 0) & (jj + dx < w)
        contrib = jnp.dot(sh.astype(jnp.bfloat16), w2_ref[t],
                          preferred_element_type=jnp.float32)
        acc = acc + jnp.where(valid, contrib, 0.0)
    y2 = jnp.maximum(acc * s2_ref[...] + t2_ref[...], 0.0).astype(jnp.bfloat16)

    pre = jnp.dot(y2, w3_ref[...], preferred_element_type=jnp.float32)
    pre = pre * s3_ref[...] + t3_ref[...] + x.astype(jnp.float32)
    if emit_pre:
        out_refs[0][...] = pre.astype(out_refs[0].dtype)
        out_refs[1][...] = jnp.maximum(pre, 0.0).astype(out_refs[1].dtype)
    else:
        out_refs[0][...] = jnp.maximum(pre, 0.0).astype(out_refs[0].dtype)


def _maxpool_kernel(x_ref, o_ref):
    """3x3 window max at every offset of a single zero-padded image block."""
    # TODO(synk): compute only the stride-2 output rows/cols in-kernel and make
    # the store lane-dense (wo*c on lanes); negligible at this problem size.
    x = x_ref[0]                                  # (hp, wp, c)
    hp, wp, _ = x.shape
    m = jnp.maximum(jnp.maximum(x[:, 0:wp - 2, :], x[:, 1:wp - 1, :]), x[:, 2:wp, :])
    o_ref[0] = jnp.maximum(jnp.maximum(m[0:hp - 2], m[1:hp - 1]), m[2:hp])


def _interp_kernel(b_ref, x_ref, o_ref):
    """Fused bilinear (align_corners=True) resize: out = B @ x, B = kron(Ah, Aw)."""
    o_ref[0] = jnp.dot(b_ref[...], x_ref[0],
                       preferred_element_type=jnp.float32).astype(o_ref.dtype)


# ---------------------------------------------------------------------------
# memoized pallas_call builders (one Mosaic compile per distinct configuration)
# ---------------------------------------------------------------------------
_SEM2 = ("parallel", "parallel")


@functools.lru_cache(maxsize=None)
def _conv_mm_call(M, K, N, relu):
    TM = _pick_tile(M, 512, 16)
    TN = _pick_tile(N, 256, 128)
    fn = pl.pallas_call(
        functools.partial(_mm_affine_kernel, relu=relu),
        out_shape=jax.ShapeDtypeStruct((M, N), jnp.bfloat16),
        grid=(M // TM, N // TN),
        in_specs=[
            pl.BlockSpec((TM, K), lambda i, j: (i, 0)),
            pl.BlockSpec((K, TN), lambda i, j: (0, j)),
            pl.BlockSpec((1, TN), lambda i, j: (0, j)),
            pl.BlockSpec((1, TN), lambda i, j: (0, j)),
        ],
        out_specs=pl.BlockSpec((TM, TN), lambda i, j: (i, j)),
        compiler_params=pltpu.CompilerParams(dimension_semantics=_SEM2,
                                             vmem_limit_bytes=VMEM_LIMIT),
        cost_estimate=pl.CostEstimate(
            flops=2 * M * K * N, transcendentals=0,
            bytes_accessed=2 * (M * K + K * N + M * N) + 8 * N),
    )
    return jax.jit(fn)


@functools.lru_cache(maxsize=None)
def _conv_mm_res_call(M, K, N, emit_pre):
    TM = _pick_tile(M, 512, 16)
    TN = _pick_tile(N, 256, 128)
    post = jax.ShapeDtypeStruct((M, N), jnp.bfloat16)
    pre = jax.ShapeDtypeStruct((M, N), jnp.float32)
    out_blk = pl.BlockSpec((TM, TN), lambda i, j: (i, j))
    fn = pl.pallas_call(
        functools.partial(_mm_affine_res_kernel, emit_pre=emit_pre),
        out_shape=(pre, post) if emit_pre else post,
        grid=(M // TM, N // TN),
        in_specs=[
            pl.BlockSpec((TM, K), lambda i, j: (i, 0)),
            pl.BlockSpec((K, TN), lambda i, j: (0, j)),
            pl.BlockSpec((1, TN), lambda i, j: (0, j)),
            pl.BlockSpec((1, TN), lambda i, j: (0, j)),
            pl.BlockSpec((TM, TN), lambda i, j: (i, j)),
        ],
        out_specs=(out_blk, out_blk) if emit_pre else out_blk,
        compiler_params=pltpu.CompilerParams(dimension_semantics=_SEM2,
                                             vmem_limit_bytes=VMEM_LIMIT),
        cost_estimate=pl.CostEstimate(
            flops=2 * M * K * N, transcendentals=0,
            bytes_accessed=2 * (M * K + K * N + 2 * M * N) + 8 * N
                           + (4 * M * N if emit_pre else 0)),
    )
    return jax.jit(fn)


@functools.lru_cache(maxsize=None)
def _fused_bneck_call(M, TM, cin, width, cout, h, w, emit_pre):
    post = jax.ShapeDtypeStruct((M, cout), jnp.bfloat16)
    pre = jax.ShapeDtypeStruct((M, cout), jnp.float32)
    out_blk = pl.BlockSpec((TM, cout), lambda i: (i, 0))
    flops = 2 * M * (cin * width + 9 * width * width + width * cout)
    bytes_acc = (2 * (M * cin + cin * width + 9 * width * width + width * cout
                      + M * cout)
                 + (4 * M * cout if emit_pre else 0))
    fn = pl.pallas_call(
        functools.partial(_bottleneck_fused_kernel, h=h, w=w, emit_pre=emit_pre),
        out_shape=(pre, post) if emit_pre else post,
        grid=(M // TM,),
        in_specs=[
            pl.BlockSpec((TM, cin), lambda i: (i, 0)),
            pl.BlockSpec((cin, width), lambda i: (0, 0)),
            pl.BlockSpec((1, width), lambda i: (0, 0)),
            pl.BlockSpec((1, width), lambda i: (0, 0)),
            pl.BlockSpec((9, width, width), lambda i: (0, 0, 0)),
            pl.BlockSpec((1, width), lambda i: (0, 0)),
            pl.BlockSpec((1, width), lambda i: (0, 0)),
            pl.BlockSpec((width, cout), lambda i: (0, 0)),
            pl.BlockSpec((1, cout), lambda i: (0, 0)),
            pl.BlockSpec((1, cout), lambda i: (0, 0)),
        ],
        out_specs=(out_blk, out_blk) if emit_pre else out_blk,
        compiler_params=pltpu.CompilerParams(dimension_semantics=("parallel",),
                                             vmem_limit_bytes=VMEM_LIMIT),
        cost_estimate=pl.CostEstimate(flops=flops, transcendentals=0,
                                      bytes_accessed=bytes_acc),
    )
    return jax.jit(fn)


@functools.lru_cache(maxsize=None)
def _maxpool_call(n, hp, wp, c):
    fn = pl.pallas_call(
        _maxpool_kernel,
        out_shape=jax.ShapeDtypeStruct((n, hp - 2, wp - 2, c), jnp.bfloat16),
        grid=(n,),
        in_specs=[pl.BlockSpec((1, hp, wp, c), lambda i: (i, 0, 0, 0))],
        out_specs=pl.BlockSpec((1, hp - 2, wp - 2, c), lambda i: (i, 0, 0, 0)),
        compiler_params=pltpu.CompilerParams(dimension_semantics=("parallel",),
                                             vmem_limit_bytes=VMEM_LIMIT),
    )
    return jax.jit(fn)


@functools.lru_cache(maxsize=None)
def _interp_call(n, pq, hw, c):
    fn = pl.pallas_call(
        _interp_kernel,
        out_shape=jax.ShapeDtypeStruct((n, pq, c), jnp.float32),
        grid=(n,),
        in_specs=[pl.BlockSpec((pq, hw), lambda i: (0, 0)),
                  pl.BlockSpec((1, hw, c), lambda i: (i, 0, 0))],
        out_specs=pl.BlockSpec((1, pq, c), lambda i: (i, 0, 0)),
        compiler_params=pltpu.CompilerParams(dimension_semantics=("parallel",),
                                             vmem_limit_bytes=VMEM_LIMIT),
        cost_estimate=pl.CostEstimate(
            flops=2 * n * pq * hw * c, transcendentals=0,
            bytes_accessed=4 * (pq * hw + n * hw * c + n * pq * c)),
    )
    return jax.jit(fn)


# ---------------------------------------------------------------------------
# thin wrappers
# ---------------------------------------------------------------------------
def conv_mm(x2d, w_mat, scale, shift, *, relu):
    M, K = x2d.shape
    N = w_mat.shape[1]
    return _conv_mm_call(M, K, N, bool(relu))(x2d, w_mat, scale, shift)


def conv_mm_residual(x2d, w_mat, scale, shift, res2d, *, emit_pre):
    M, K = x2d.shape
    N = w_mat.shape[1]
    return _conv_mm_res_call(M, K, N, bool(emit_pre))(x2d, w_mat, scale, shift, res2d)


def _im2col(x_nhwc, ksize, stride, pad):
    """(N,H,W,C) -> (N*Ho*Wo, k*k*C); ordering matches the HWIO weight reshape."""
    n, h, w, c = x_nhwc.shape
    ho = (h + 2 * pad - ksize) // stride + 1
    wo = (w + 2 * pad - ksize) // stride + 1
    xp = jnp.pad(x_nhwc, ((0, 0), (pad, pad), (pad, pad), (0, 0)))
    cols = []
    for dy in range(ksize):
        for dx in range(ksize):
            cols.append(xp[:, dy:dy + stride * ho:stride, dx:dx + stride * wo:stride, :])
    patches = jnp.concatenate(cols, axis=-1)
    return patches.reshape(n * ho * wo, ksize * ksize * c), (n, ho, wo)


def conv_bn(x_nhwc, cp, ksize, stride, relu):
    """Conv2d(bias=False) + frozen BN + optional ReLU as one fused Pallas matmul
    (used only for the 7x7 stem and the 4 downsample/stride-2 transition blocks)."""
    cout = cp["w"].shape[1]
    if ksize == 1:
        # TODO(synk): fold the stride-2 selection into the BlockSpec index_map
        # instead of a wrapper-side strided slice (only 3 downsample convs).
        xs = x_nhwc[:, ::stride, ::stride, :] if stride > 1 else x_nhwc
        n, ho, wo, ci = xs.shape
        x2d = xs.reshape(n * ho * wo, ci)
    else:
        x2d, (n, ho, wo) = _im2col(x_nhwc, ksize, stride, ksize // 2)
    y = conv_mm(x2d, cp["w"], cp["s"], cp["t"], relu=relu)
    return y.reshape(n, ho, wo, cout)


def maxpool_3x3_s2_p1(x_nhwc):
    """3x3 / stride-2 / pad-1 max pool.  Input is post-ReLU (>=0) so zero
    padding is equivalent to -inf padding."""
    n, h, w, c = x_nhwc.shape
    ho = (h + 2 - 3) // 2 + 1
    wo = (w + 2 - 3) // 2 + 1
    xp = jnp.pad(x_nhwc, ((0, 0), (1, 1), (1, 1), (0, 0)))
    dense = _maxpool_call(n, h + 2, w + 2, c)(xp)          # window max at every offset
    return dense[:, 0:2 * ho:2, 0:2 * wo:2, :]


def _interp_matrix(in_size, out_size):
    """Dense 1-D interpolation matrix matching F.interpolate(align_corners=True)."""
    A = np.zeros((out_size, in_size), np.float32)
    if in_size == 1 or out_size == 1:
        A[:, 0] = 1.0
        return A
    scale = (in_size - 1) / (out_size - 1)
    for p in range(out_size):
        src = p * scale
        i0 = min(int(np.floor(src)), in_size - 2)
        f = src - i0
        A[p, i0] += 1.0 - f
        A[p, i0 + 1] += f
    return A


def bilinear_to_nchw(f_nhwc, out_size):
    """F.interpolate(..., 'bilinear', align_corners=True) + NCHW transpose as one
    matmul kernel per feature (B = kron(Ah, Aw)); no intermediate / no transposes."""
    n, h, w, c = f_nhwc.shape
    B = np.kron(_interp_matrix(h, out_size), _interp_matrix(w, out_size))
    hw = h * w
    f3 = f_nhwc.reshape(n, hw, c)
    if hw < 8:                                             # pad tiny contraction dims
        f3 = jnp.pad(f3, ((0, 0), (0, 8 - hw), (0, 0)))
        B = np.pad(B, ((0, 0), (0, 8 - hw)))
        hw = 8
    y = _interp_call(n, out_size * out_size, hw, c)(jnp.asarray(B), f3)
    y = y.reshape(n, out_size, out_size, c)
    return jnp.transpose(y, (0, 3, 1, 2))


# ---------------------------------------------------------------------------
# bottleneck dispatch + full hyperpixel feature extraction
# ---------------------------------------------------------------------------
def fused_bottleneck(x_nhwc, bw, emit_pre):
    n, h, w, cin = x_nhwc.shape
    mi = h * w
    width = bw["w1"].shape[1]
    cout = bw["w3"].shape[1]
    rows_pb = mi if mi % 8 == 0 else n * mi        # whole images per block
    x2d = x_nhwc.reshape(n * mi, cin)
    call = _fused_bneck_call(n * mi, rows_pb, cin, width, cout, h, w, bool(emit_pre))
    outs = call(x2d, bw["w1"], bw["s1"], bw["t1"], bw["w2"], bw["s2"], bw["t2"],
                bw["w3"], bw["s3"], bw["t3"])
    if emit_pre:
        pre, post = outs
        return pre.reshape(n, h, w, cout), post.reshape(n, h, w, cout)
    return None, outs.reshape(n, h, w, cout)


def transition_bottleneck(x_nhwc, bw, stride, emit_pre):
    y1 = conv_bn(x_nhwc, bw["conv1"], 1, 1, True)
    y2 = conv_bn(y1, bw["conv2"], 3, stride, True)
    n, ho, wo, width = y2.shape
    cout = bw["conv3"]["w"].shape[1]
    res = conv_bn(x_nhwc, bw["down"], 1, stride, False) if "down" in bw else x_nhwc
    res2d = res.reshape(n * ho * wo, cout)
    outs = conv_mm_residual(y2.reshape(n * ho * wo, width), bw["conv3"]["w"],
                            bw["conv3"]["s"], bw["conv3"]["t"], res2d,
                            emit_pre=emit_pre)
    if emit_pre:
        pre, post = outs
        return pre.reshape(n, ho, wo, cout), post.reshape(n, ho, wo, cout)
    return None, outs.reshape(n, ho, wo, cout)


def feature_extraction_forward(img_nchw, weights, meta, hyperpixel_ids, feature_size):
    x = jnp.transpose(img_nchw, (0, 2, 3, 1)).astype(jnp.bfloat16)    # NCHW -> NHWC
    feats = []
    feat = conv_bn(x, weights["stem"], 7, 2, True)                    # conv1+bn1+relu
    feat = maxpool_3x3_s2_p1(feat)
    if 0 in hyperpixel_ids:
        feats.append(feat.astype(jnp.float32))
    for hid, (bw, bm) in enumerate(zip(weights["blocks"], meta)):
        emit_pre = (hid + 1) in hyperpixel_ids
        if bm.fused:
            pre, post = fused_bottleneck(feat, bw, emit_pre)
        else:
            pre, post = transition_bottleneck(feat, bw, bm.stride, emit_pre)
        if emit_pre:
            feats.append(pre)            # PyTorch appends feat BEFORE the trailing relu
        feat = post
    return [bilinear_to_nchw(f, feature_size) for f in feats]


# ---------------------------------------------------------------------------
# deterministic synthetic parameters (ResNet-101 architecture) + preparation
# ---------------------------------------------------------------------------
def _conv_params(key, ksize, cin, cout):
    kw, k1, k2, k3, k4 = jax.random.split(key, 5)
    fan_in = ksize * ksize * cin
    return {
        "w": jax.random.normal(kw, (ksize, ksize, cin, cout), jnp.float32)
             * (0.5 / np.sqrt(fan_in)),                              # HWIO
        "gamma": 1.0 + 0.1 * jax.random.normal(k1, (cout,), jnp.float32),
        "beta": 0.05 * jax.random.normal(k2, (cout,), jnp.float32),
        "mean": 0.05 * jax.random.normal(k3, (cout,), jnp.float32),
        "var": 0.9 + 0.2 * jax.random.uniform(k4, (cout,), jnp.float32),
    }


def init_resnet101_params(key):
    nbottlenecks = [3, 4, 23, 3]
    widths = [64, 128, 256, 512]
    k_stem, k_rest = jax.random.split(key)
    params = {"stem": _conv_params(k_stem, 7, 3, 64), "layers": []}
    kiter = iter(jax.random.split(k_rest, sum(nbottlenecks) * 4))
    inplanes = 64
    for li, (nb, width) in enumerate(zip(nbottlenecks, widths)):
        layer = []
        for bid in range(nb):
            stride = (1 if li == 0 else 2) if bid == 0 else 1
            blk = {
                "stride": stride,
                "conv1": _conv_params(next(kiter), 1, inplanes, width),
                "conv2": _conv_params(next(kiter), 3, width, width),
                "conv3": _conv_params(next(kiter), 1, width, width * 4),
                "down": _conv_params(next(kiter), 1, inplanes, width * 4) if bid == 0 else None,
            }
            if blk["down"] is None:
                _ = next(kiter)
            layer.append(blk)
            inplanes = width * 4
        params["layers"].append(layer)
    return params


def _prep_conv(p):
    cout = p["w"].shape[3]
    s, t = _fold_bn(p)
    return {"w": p["w"].reshape(-1, cout).astype(jnp.bfloat16), "s": s, "t": t}


def prepare_params(params):
    """Fold BN, reshape weights for matmul, cast weights to bf16; split the
    static metadata (needed for Python control flow) from the array pytree."""
    blocks, meta = [], []
    for layer in params["layers"]:
        for blk in layer:
            fused = (blk["down"] is None) and (blk["stride"] == 1)
            meta.append(BlockMeta(fused=fused, stride=blk["stride"],
                                  has_down=blk["down"] is not None))
            if fused:
                c1, c2, c3 = blk["conv1"], blk["conv2"], blk["conv3"]
                width = c1["w"].shape[3]
                s1, t1 = _fold_bn(c1)
                s2, t2 = _fold_bn(c2)
                s3, t3 = _fold_bn(c3)
                blocks.append({
                    "w1": c1["w"].reshape(-1, width).astype(jnp.bfloat16),
                    "s1": s1, "t1": t1,
                    "w2": c2["w"].reshape(9, width, width).astype(jnp.bfloat16),
                    "s2": s2, "t2": t2,
                    "w3": c3["w"].reshape(width, -1).astype(jnp.bfloat16),
                    "s3": s3, "t3": t3,
                })
            else:
                b = {"conv1": _prep_conv(blk["conv1"]),
                     "conv2": _prep_conv(blk["conv2"]),
                     "conv3": _prep_conv(blk["conv3"])}
                if blk["down"] is not None:
                    b["down"] = _prep_conv(blk["down"])
                blocks.append(b)
    return {"stem": _prep_conv(params["stem"]), "blocks": blocks}, tuple(meta)


# ---------------------------------------------------------------------------
# pure-JAX reference (independent formulation) for correctness checking
# ---------------------------------------------------------------------------
def _ref_conv_bn(x_nhwc, p, stride, relu):
    k = p["w"].shape[0]
    pad = k // 2
    y = lax.conv_general_dilated(
        x_nhwc, p["w"], window_strides=(stride, stride),
        padding=[(pad, pad), (pad, pad)],
        dimension_numbers=("NHWC", "HWIO", "NHWC"),
        precision=lax.Precision.HIGHEST)
    scale, shift = _fold_bn(p)
    y = y * scale[0] + shift[0]
    return jnp.maximum(y, 0.0) if relu else y


def _ref_maxpool(x):
    return lax.reduce_window(x, -jnp.inf, lax.max, (1, 3, 3, 1), (1, 2, 2, 1),
                             [(0, 0), (1, 1), (1, 1), (0, 0)])


def _ref_bilinear(x, out_h, out_w):
    n, h, w, c = x.shape

    def axis(o, i):
        if o == 1 or i == 1:
            s = np.zeros((o,), np.float64)
        else:
            s = np.arange(o, dtype=np.float64) * (i - 1) / (o - 1)
        lo = np.minimum(np.floor(s).astype(np.int32), max(i - 2, 0))
        hi = np.minimum(lo + 1, i - 1).astype(np.int32)
        f = (s - lo).astype(np.float32)
        return jnp.asarray(lo), jnp.asarray(hi), jnp.asarray(f)

    y0, y1, fy = axis(out_h, h)
    x0, x1, fx = axis(out_w, w)
    fy_ = fy[None, :, None, None]
    fx_ = fx[None, None, :, None]
    top = x[:, y0][:, :, x0] * (1 - fx_) + x[:, y0][:, :, x1] * fx_
    bot = x[:, y1][:, :, x0] * (1 - fx_) + x[:, y1][:, :, x1] * fx_
    return top * (1 - fy_) + bot * fy_


def ref_forward(img_nchw, params, hyperpixel_ids, feature_size):
    x = jnp.transpose(img_nchw, (0, 2, 3, 1))
    feats = []
    feat = _ref_conv_bn(x, params["stem"], 2, True)
    feat = _ref_maxpool(feat)
    if 0 in hyperpixel_ids:
        feats.append(feat)
    hid = 0
    for layer in params["layers"]:
        for blk in layer:
            res = feat
            y = _ref_conv_bn(feat, blk["conv1"], 1, True)
            y = _ref_conv_bn(y, blk["conv2"], blk["stride"], True)
            y = _ref_conv_bn(y, blk["conv3"], 1, False)
            if blk["down"] is not None:
                res = _ref_conv_bn(res, blk["down"], blk["stride"], False)
            pre = y + res
            if (hid + 1) in hyperpixel_ids:
                feats.append(pre)
            feat = jnp.maximum(pre, 0.0)
            hid += 1
    return [jnp.transpose(_ref_bilinear(f, feature_size, feature_size), (0, 3, 1, 2))
            for f in feats]


# ---------------------------------------------------------------------------
# main
# ---------------------------------------------------------------------------
if __name__ == "__main__":
    key = jax.random.PRNGKey(0)
    k_img, k_par = jax.random.split(key)

    B, H, W = 2, 64, 64
    feature_size = 16
    hyperpixel_ids = [0, 2, 7, 16, 25, 33]

    img = jax.random.normal(k_img, (B, 3, H, W), jnp.float32)
    params = init_resnet101_params(k_par)
    weights, meta = prepare_params(params)

    fwd = jax.jit(feature_extraction_forward,
                  static_argnames=("meta", "hyperpixel_ids", "feature_size"))
    feats = fwd(img, weights, meta=meta,
                hyperpixel_ids=tuple(hyperpixel_ids), feature_size=feature_size)
    feats = jax.block_until_ready(feats)

    refs = ref_forward(img, params, hyperpixel_ids, feature_size)
    refs = jax.block_until_ready(refs)

    assert len(feats) == len(refs) == len(hyperpixel_ids)
    for f, r in zip(feats, refs):
        assert f.shape == r.shape and f.shape[0] == B and f.shape[2:] == (feature_size, feature_size)
        err = float(jnp.max(jnp.abs(f - r)))
        scale = float(jnp.max(jnp.abs(r))) + 1e-6
        # bf16 weights/activations vs f32 reference -> slightly looser tolerance
        assert err / scale < 5e-2, f"relative error {err / scale:.3e} (abs {err:.3e})"

    print("KERNEL_OK")
</pallas_src>

<mosaic_0001>
module attributes {stable_mosaic.version = 11 : i64} {
  func.func @_mm_affine_kernel(%arg0: i32, %arg1: i32, %arg2: memref<512x147xbf16, #tpu.memory_space<vmem>>, %arg3: memref<147x64xbf16, #tpu.memory_space<vmem>>, %arg4: memref<1x64xf32, #tpu.memory_space<vmem>>, %arg5: memref<1x64xf32, #tpu.memory_space<vmem>>, %arg6: memref<512x64xbf16, #tpu.memory_space<vmem>>) attributes {dimension_semantics = [#tpu.dimension_semantics<parallel>, #tpu.dimension_semantics<parallel>], iteration_bounds = array<i64: 4, 1>, scalar_prefetch = 0 : i64, scratch_operands = 0 : i64, tpu.core_type = #tpu.core_type<tc>, window_params = [{transform_indices = @transform_0, window_bounds = array<i64: 512, 147>}, {transform_indices = @transform_1, window_bounds = array<i64: 147, 64>}, {transform_indices = @transform_2, window_bounds = array<i64: 1, 64>}, {transform_indices = @transform_3, window_bounds = array<i64: 1, 64>}, {transform_indices = @transform_4, window_bounds = array<i64: 512, 64>}]} {
    %c0 = arith.constant 0 : index
    %c0_0 = arith.constant 0 : index
    %0 = vector.load %arg2[%c0, %c0_0] : memref<512x147xbf16, #tpu.memory_space<vmem>>, vector<512x147xbf16>
    %c0_1 = arith.constant 0 : index
    %c0_2 = arith.constant 0 : index
    %1 = vector.load %arg3[%c0_1, %c0_2] : memref<147x64xbf16, #tpu.memory_space<vmem>>, vector<147x64xbf16>
    %cst = arith.constant dense<0.000000e+00> : vector<512x64xf32>
    %2 = tpu.matmul %0, %1, %cst {dimension_numbers = #tpu.dot_dimension_numbers<[1], [0], [0], [1], [0, 0, 1, 1], [], []>} : vector<512x147xbf16>, vector<147x64xbf16>, vector<512x64xf32> -> vector<512x64xf32>
    %c0_3 = arith.constant 0 : index
    %c0_4 = arith.constant 0 : index
    %3 = vector.load %arg4[%c0_3, %c0_4] : memref<1x64xf32, #tpu.memory_space<vmem>>, vector<1x64xf32>
    %4 = vector.broadcast %3 : vector<1x64xf32> to vector<512x64xf32>
    %5 = arith.mulf %2, %4 : vector<512x64xf32>
    %c0_5 = arith.constant 0 : index
    %c0_6 = arith.constant 0 : index
    %6 = vector.load %arg5[%c0_5, %c0_6] : memref<1x64xf32, #tpu.memory_space<vmem>>, vector<1x64xf32>
    %7 = vector.broadcast %6 : vector<1x64xf32> to vector<512x64xf32>
    %8 = arith.addf %5, %7 : vector<512x64xf32>
    %cst_7 = arith.constant 0.000000e+00 : f32
    %9 = vector.broadcast %cst_7 : f32 to vector<512x64xf32>
    %10 = arith.maximumf %8, %9 : vector<512x64xf32>
    %11 = arith.truncf %10 : vector<512x64xf32> to vector<512x64xbf16>
    %c0_8 = arith.constant 0 : index
    %c0_9 = arith.constant 0 : index
    %12 = vector.load %arg6[%c0_8, %c0_9] : memref<512x64xbf16, #tpu.memory_space<vmem>>, vector<512x64xbf16>
    tpu.vector_store %arg6[%c0_8, %c0_9], %11 {strides = array<i32>} : memref<512x64xbf16, #tpu.memory_space<vmem>>, vector<512x64xbf16>,
    return
  }
  func.func @transform_0(%arg0: i32, %arg1: i32) -> (i32, i32) {
    %c0_i32 = arith.constant 0 : i32
    %c0_i32_0 = arith.constant 0 : i32
    return %arg0, %c0_i32 : i32, i32
  }
  func.func @transform_1(%arg0: i32, %arg1: i32) -> (i32, i32) {
    %c0_i32 = arith.constant 0 : i32
    %c0_i32_0 = arith.constant 0 : i32
    return %c0_i32, %arg1 : i32, i32
  }
  func.func @transform_2(%arg0: i32, %arg1: i32) -> (i32, i32) {
    %c0_i32 = arith.constant 0 : i32
    %c0_i32_0 = arith.constant 0 : i32
    return %c0_i32, %arg1 : i32, i32
  }
  func.func @transform_3(%arg0: i32, %arg1: i32) -> (i32, i32) {
    %c0_i32 = arith.constant 0 : i32
    %c0_i32_0 = arith.constant 0 : i32
    return %c0_i32, %arg1 : i32, i32
  }
  func.func @transform_4(%arg0: i32, %arg1: i32) -> (i32, i32) {
    %c0_i32 = arith.constant 0 : i32
    return %arg0, %arg1 : i32, i32
  }
}

</mosaic_0001>

<llo_original>
// kernel: tpu_custom_call.1
$region0: #{tpu_custom_call.1}
  #allocation0 [shape = 'u32[]', space=smem, size = 0x4, offset = 0x4, fixed_abs, tag = 'smem constant byte address 0x4 - core index']
  #allocation1 [shape = 'u32[144,128]{1,0:T(1,128)}', space=vmem, size = 0x12000, scoped, tag = 'internal scratch']
  %s0 = inlined_call_operand.vmem [shape: bf16[2048,147], index: 0, kind: input, shape index: {}]
  %s1 = inlined_call_operand.vmem [shape: bf16[147,64], index: 1, kind: input, shape index: {}]
  %s2 = inlined_call_operand.vmem [shape: f32[1,64], index: 2, kind: input, shape index: {}]
  %s3 = inlined_call_operand.vmem [shape: f32[1,64], index: 3, kind: input, shape index: {}]
  %s4 = inlined_call_operand.vmem [shape: bf16[2048,64], index: 4, kind: output, shape index: {}]
  %s5 = sld [smem:[#allocation0]]
  $region49: #{tpu_custom_call.1} parent=0
    _
  %s7 = ssub.s32 1, %s5
  %s8 = scalar_select 0, %s7, %s5
  loop: start=0, step=1, limit=6
  $region2: #{tpu_custom_call.1} parent=0 // loop_pre_header
    _
  $region3: #{tpu_custom_call.1} parent=0 // loop_header
    %s10 = sphi 0, %s14
    %p11 = scmp.ge.s32.totalorder %s10, 6
    %s17 = sphi 0, %s29
    %s18 = sphi 0, %s25
    %s19 = sphi 0, %s17
    %s20 = sphi 0, %s18
    %s21 = sphi 0, %s19
    %s22 = sphi 0, %s20
    %s32 = sphi 0, %s34
    %s35 = sphi 0, %s32
    %s36 = sphi 0, %s35
    %s52 = sphi 0, %s36
    %s58 = sphi 0, %s60
    %s61 = sphi 0, %s58
    %s62 = sphi 0, %s61
    %s78 = sphi 0, %s62
    %s84 = sphi 0, %s86
    %s87 = sphi 0, %s84
    %s88 = sphi 0, %s87
    %s104 = sphi 0, %s88
    %s110 = sphi 0, %s112
    %s113 = sphi 0, %s110
    %s114 = sphi 0, %s113
    %s130 = sphi 0, %s114
    %s138 = sphi 0, %s140
    %s141 = sphi 0, %s138
    %s142 = sphi 0, %s141
    %s158 = sphi 0, %s142
  $region4: #{tpu_custom_call.1} parent=0 // loop_header_branch
    %13 = sbr.rel (%p11) target = $region8
  $region5: #{tpu_custom_call.1} parent=0 // loop_body
    %s15 = ssub.s32 %s10, 1
    %s16 = ssub.s32 %s10, 2
    %s23 = sadd.s32 1, %s18
    %p24 = scmp.ge.s32.totalorder %s23, 1
    %s25 = scalar_select %p24, 0, %s23
    %s26 = sadd.s32 1, %s17
    %s27 = scalar_select %p24, %s26, %s17
    %p28 = scmp.ge.s32.totalorder %s27, 4
    %s29 = scalar_select %p28, 0, %s27
    %s30 = ssub.s32 %s17, %s29
    %p31 = scmp.eq.s32.totalorder %s30, 0
    %s33 = sadd.s32 %s32, 1
    %s34 = scalar_select %p31, %s32, %s33
    %p37 = pneg %p31
    %p38 = scmp.eq.s32.totalorder %s10, 3
    %p39 = por %p37, %p38
    %p40 = scmp.ne.s32.totalorder %s32, %s35
    %p41 = scmp.eq.s32.totalorder %s10, 0
    %p42 = por %p40, %p41
    %p43 = scmp.ne.s32.totalorder %s32, %s35
    %p44 = scmp.eq.s32.totalorder %s15, 3
    %p45 = por %p43, %p44
    %p46 = scmp.ne.s32.totalorder %s35, %s36
    %p47 = scmp.eq.s32.totalorder %s15, 0
    %p48 = por %p46, %p47
    %p49 = scmp.ne.s32.totalorder %s35, %s36
    %p50 = scmp.eq.s32.totalorder %s16, 3
    %p51 = por %p49, %p50
    %p53 = scmp.ne.s32.totalorder %s36, %s52
    %p54 = scmp.eq.s32.totalorder %s16, 0
    %p55 = por %p53, %p54
    %s56 = ssub.s32 %s18, %s25
    %p57 = scmp.eq.s32.totalorder %s56, 0
    %s59 = sadd.s32 %s58, 1
    %s60 = scalar_select %p57, %s58, %s59
    %p63 = pneg %p57
    %p64 = scmp.eq.s32.totalorder %s10, 3
    %p65 = por %p63, %p64
    %p66 = scmp.ne.s32.totalorder %s58, %s61
    %p67 = scmp.eq.s32.totalorder %s10, 0
    %p68 = por %p66, %p67
    %p69 = scmp.ne.s32.totalorder %s58, %s61
    %p70 = scmp.eq.s32.totalorder %s15, 3
    %p71 = por %p69, %p70
    %p72 = scmp.ne.s32.totalorder %s61, %s62
    %p73 = scmp.eq.s32.totalorder %s15, 0
    %p74 = por %p72, %p73
    %p75 = scmp.ne.s32.totalorder %s61, %s62
    %p76 = scmp.eq.s32.totalorder %s16, 3
    %p77 = por %p75, %p76
    %p79 = scmp.ne.s32.totalorder %s62, %s78
    %p80 = scmp.eq.s32.totalorder %s16, 0
    %p81 = por %p79, %p80
    %s82 = ssub.s32 %s18, %s25
    %p83 = scmp.eq.s32.totalorder %s82, 0
    %s85 = sadd.s32 %s84, 1
    %s86 = scalar_select %p83, %s84, %s85
    %p89 = pneg %p83
    %p90 = scmp.eq.s32.totalorder %s10, 3
    %p91 = por %p89, %p90
    %p92 = scmp.ne.s32.totalorder %s84, %s87
    %p93 = scmp.eq.s32.totalorder %s10, 0
    %p94 = por %p92, %p93
    %p95 = scmp.ne.s32.totalorder %s84, %s87
    %p96 = scmp.eq.s32.totalorder %s15, 3
    %p97 = por %p95, %p96
    %p98 = scmp.ne.s32.totalorder %s87, %s88
    %p99 = scmp.eq.s32.totalorder %s15, 0
    %p100 = por %p98, %p99
    %p101 = scmp.ne.s32.totalorder %s87, %s88
    %p102 = scmp.eq.s32.totalorder %s16, 3
    %p103 = por %p101, %p102
    %p105 = scmp.ne.s32.totalorder %s88, %s104
    %p106 = scmp.eq.s32.totalorder %s16, 0
    %p107 = por %p105, %p106
    %s108 = ssub.s32 %s18, %s25
    %p109 = scmp.eq.s32.totalorder %s108, 0
    %s111 = sadd.s32 %s110, 1
    %s112 = scalar_select %p109, %s110, %s111
    %p115 = pneg %p109
    %p116 = scmp.eq.s32.totalorder %s10, 3
    %p117 = por %p115, %p116
    %p118 = scmp.ne.s32.totalorder %s110, %s113
    %p119 = scmp.eq.s32.totalorder %s10, 0
    %p120 = por %p118, %p119
    %p121 = scmp.ne.s32.totalorder %s110, %s113
    %p122 = scmp.eq.s32.totalorder %s15, 3
    %p123 = por %p121, %p122
    %p124 = scmp.ne.s32.totalorder %s113, %s114
    %p125 = scmp.eq.s32.totalorder %s15, 0
    %p126 = por %p124, %p125
    %p127 = scmp.ne.s32.totalorder %s113, %s114
    %p128 = scmp.eq.s32.totalorder %s16, 3
    %p129 = por %p127, %p128
    %p131 = scmp.ne.s32.totalorder %s114, %s130
    %p132 = scmp.eq.s32.totalorder %s16, 0
    %p133 = por %p131, %p132
    %s134 = ssub.s32 %s17, %s29
    %s135 = ssub.s32 %s18, %s25
    %s136 = sor.u32 %s134, %s135
    %p137 = scmp.eq.s32.totalorder %s136, 0
    %s139 = sadd.s32 %s138, 1
    %s140 = scalar_select %p137, %s138, %s139
    %p143 = pneg %p137
    %p144 = scmp.eq.s32.totalorder %s10, 3
    %p145 = por %p143, %p144
    %p146 = scmp.ne.s32.totalorder %s138, %s141
    %p147 = scmp.eq.s32.totalorder %s10, 0
    %p148 = por %p146, %p147
    %p149 = scmp.ne.s32.totalorder %s138, %s141
    %p150 = scmp.eq.s32.totalorder %s15, 3
    %p151 = por %p149, %p150
    %p152 = scmp.ne.s32.totalorder %s141, %s142
    %p153 = scmp.eq.s32.totalorder %s15, 0
    %p154 = por %p152, %p153
    %p155 = scmp.ne.s32.totalorder %s141, %s142
    %p156 = scmp.eq.s32.totalorder %s16, 3
    %p157 = por %p155, %p156
    %p159 = scmp.ne.s32.totalorder %s142, %s158
    %p160 = scmp.eq.s32.totalorder %s16, 0
    %p161 = por %p159, %p160
    %p162 = scmp.le.s32.totalorder 1, %s10
    %p163 = scmp.lt.s32.totalorder %s10, 5
    %p164 = pnand %p162, %p163
    %p165 = pneg %p164
    // Predicated region
    $region9: #{tpu_custom_call.1} parent=5 // pred_check
      _
    $region10: #{tpu_custom_call.1} parent=5 // pred_check_branch
      %167 = sbr.rel (%p164) target = $region12
    $region11: #{tpu_custom_call.1} parent=5 // pred_region
      %s168 = ssub.s32 %s10, 1
      // Predicated region
      $region13: #{tpu_custom_call.1} parent=11 // pred_check
        %p169 = pneg %p74
      $region14: #{tpu_custom_call.1} parent=11 // pred_check_branch
        %171 = sbr.rel (%p169) target = $region16
      $region15: #{tpu_custom_call.1} parent=11 // pred_region
        %p172 = scmp.lt.s32.totalorder %s20, 0
        %s173 = scalar_select %p172, %s20, 0
        %s174 = smul.addr %s173, 4
        %s175 = scalar_lea.vmem %s1, %s174
      $region16: #{tpu_custom_call.1} parent=11 // pred_fallthru
        _
      // Predicated region
      $region17: #{tpu_custom_call.1} parent=11 // pred_check
        %p176 = pneg %p100
      $region18: #{tpu_custom_call.1} parent=11 // pred_check_branch
        %178 = sbr.rel (%p176) target = $region20
      $region19: #{tpu_custom_call.1} parent=11 // pred_region
        %p179 = scmp.lt.s32.totalorder %s20, 0
        %s180 = scalar_select %p179, %s20, 0
        %s181 = scalar_lea.vmem %s2, %s180
      $region20: #{tpu_custom_call.1} parent=11 // pred_fallthru
        _
      // Predicated region
      $region21: #{tpu_custom_call.1} parent=11 // pred_check
        %p182 = pneg %p126
      $region22: #{tpu_custom_call.1} parent=11 // pred_check_branch
        %184 = sbr.rel (%p182) target = $region24
      $region23: #{tpu_custom_call.1} parent=11 // pred_region
        %p185 = scmp.lt.s32.totalorder %s20, 0
        %s186 = scalar_select %p185, %s20, 0
        %s187 = scalar_lea.vmem %s3, %s186
      $region24: #{tpu_custom_call.1} parent=11 // pred_fallthru
        _
    $region12: #{tpu_custom_call.1} parent=5 // pred_fallthru
      _
    %p188 = scmp.lt.s32.totalorder %s10, 4
    // Predicated region
    $region25: #{tpu_custom_call.1} parent=5 // pred_check
      %p189 = pneg %p188
    $region26: #{tpu_custom_call.1} parent=5 // pred_check_branch
      %191 = sbr.rel (%p189) target = $region28
    $region27: #{tpu_custom_call.1} parent=5 // pred_region
      // Predicated region
      $region29: #{tpu_custom_call.1} parent=27 // pred_check
        %p192 = pneg %p42
      $region30: #{tpu_custom_call.1} parent=27 // pred_check_branch
        %194 = sbr.rel (%p192) target = $region32
      $region31: #{tpu_custom_call.1} parent=27 // pred_region
        %s195 = smul.u32 64, %s17
        %p196 = scmp.lt.s32.totalorder %s195, 255
        %s197 = scalar_select %p196, %s195, 255
        %s198 = smul.addr %s197, 2
        %s199 = smul.addr %s198, 4
        %s200 = scalar_lea.vmem %s0, %s199
        %s201 = smul.u32 64, %s17
      $region32: #{tpu_custom_call.1} parent=27 // pred_fallthru
        _
    $region28: #{tpu_custom_call.1} parent=5 // pred_fallthru
      _
    %p202 = scmp.le.s32.totalorder 1, %s10
    %p203 = scmp.lt.s32.totalorder %s10, 5
    %p204 = pnand %p202, %p203
    %p205 = pneg %p204
    // Predicated region
    $region33: #{tpu_custom_call.1} parent=5 // pred_check
      _
    $region34: #{tpu_custom_call.1} parent=5 // pred_check_branch
      %207 = sbr.rel (%p204) target = $region36
    $region35: #{tpu_custom_call.1} parent=5 // pred_region
      %s208 = ssub.s32 %s10, 1
      %s209 = smul.u32 64, %s19
      %p210 = scmp.lt.s32.totalorder %s209, 255
      %s211 = scalar_select %p210, %s209, 255
      %s212 = smul.addr %s211, 2
      %s213 = smul.addr %s212, 4
      %s214 = scalar_lea.vmem %s0, %s213
      %p215 = pneg %p48
      %p216 = pneg %p45
      %p217 = scmp.lt.s32.totalorder %s20, 0
      %s218 = scalar_select %p217, %s20, 0
      %s219 = smul.addr %s218, 4
      %s220 = scalar_lea.vmem %s1, %s219
      %p221 = pneg %p74
      %p222 = pneg %p71
      %p223 = scmp.lt.s32.totalorder %s20, 0
      %s224 = scalar_select %p223, %s20, 0
      %s225 = scalar_lea.vmem %s2, %s224
      %p226 = pneg %p100
      %p227 = pneg %p97
      %p228 = scmp.lt.s32.totalorder %s20, 0
      %s229 = scalar_select %p228, %s20, 0
      %s230 = scalar_lea.vmem %s3, %s229
      %p231 = pneg %p126
      %p232 = pneg %p123
      %p233 = pneg %p154
      %p234 = pneg %p151
      %s235 = smul.u32 64, %s19
      %p236 = scmp.lt.s32.totalorder %s235, 255
      %s237 = scalar_select %p236, %s235, 255
      %p238 = scmp.lt.s32.totalorder %s20, 0
      %s239 = scalar_select %p238, %s20, 0
      %s240 = sadd.s32 %s239, %s237
      %s241 = smul.addr %s240, 4
      %s242 = scalar_lea.vmem %s4, %s241
      %s243 = smul.u32 64, %s19
      %p244 = scmp.lt.s32.totalorder %s243, 255
      %s245 = scalar_select %p244, %s243, 255
      %s246 = smul.addr %s245, 2
      %s247 = smul.addr %s246, 4
      %s248 = scalar_lea.vmem %s0, %s247
      %s249 = smul.u32 64, %s19
      %p250 = scmp.lt.s32.totalorder %s20, 0
      %s251 = scalar_select %p250, %s20, 0
      %s252 = smul.addr %s251, 4
      %s253 = scalar_lea.vmem %s1, %s252
      %p254 = scmp.lt.s32.totalorder %s20, 0
      %s255 = scalar_select %p254, %s20, 0
      %s256 = scalar_lea.vmem %s2, %s255
      %p257 = scmp.lt.s32.totalorder %s20, 0
      %s258 = scalar_select %p257, %s20, 0
      %s259 = scalar_lea.vmem %s3, %s258
      %s260 = smul.u32 64, %s19
      %p261 = scmp.lt.s32.totalorder %s260, 255
      %s262 = scalar_select %p261, %s260, 255
      %p263 = scmp.lt.s32.totalorder %s20, 0
      %s264 = scalar_select %p263, %s20, 0
      %s265 = sadd.s32 %s264, %s262
      %s266 = smul.addr %s265, 4
      %s267 = scalar_lea.vmem %s4, %s266
      %s268 = smul.u32 64, %s19
      %v270 = vld [vmem:[%s248] sm:$0xff]
      %v271 = vld [vmem:[%s248 + $0x8] sm:$0xff]
      %v272 = vld [vmem:[%s248 + $0x10] sm:$0xff]
      %v273 = vld [vmem:[%s248 + $0x18] sm:$0xff]
      %v274 = vld [vmem:[%s248 + $0x20] sm:$0xff]
      %v275 = vld [vmem:[%s248 + $0x28] sm:$0xff]
      %v276 = vld [vmem:[%s248 + $0x30] sm:$0xff]
      %v277 = vld [vmem:[%s248 + $0x38] sm:$0xff]
      %v278 = vld [vmem:[%s248 + $0x40] sm:$0xff]
      %v279 = vld [vmem:[%s248 + $0x48] sm:$0xff]
      %v280 = vld [vmem:[%s248 + $0x50] sm:$0xff]
      %v281 = vld [vmem:[%s248 + $0x58] sm:$0xff]
      %v282 = vld [vmem:[%s248 + $0x60] sm:$0xff]
      %v283 = vld [vmem:[%s248 + $0x68] sm:$0xff]
      %v284 = vld [vmem:[%s248 + $0x70] sm:$0xff]
      %v285 = vld [vmem:[%s248 + $0x78] sm:$0xff]
      %v286 = vld [vmem:[%s248 + $0x80] sm:$0xff]
      %v287 = vld [vmem:[%s248 + $0x88] sm:$0xff]
      %v288 = vld [vmem:[%s248 + $0x90] sm:$0xff]
      %v289 = vld [vmem:[%s248 + $0x98] sm:$0xff]
      %v290 = vld [vmem:[%s248 + $0xa0] sm:$0xff]
      %v291 = vld [vmem:[%s248 + $0xa8] sm:$0xff]
      %v292 = vld [vmem:[%s248 + $0xb0] sm:$0xff]
      %v293 = vld [vmem:[%s248 + $0xb8] sm:$0xff]
      %v294 = vld [vmem:[%s248 + $0xc0] sm:$0xff]
      %v295 = vld [vmem:[%s248 + $0xc8] sm:$0xff]
      %v296 = vld [vmem:[%s248 + $0xd0] sm:$0xff]
      %v297 = vld [vmem:[%s248 + $0xd8] sm:$0xff]
      %v298 = vld [vmem:[%s248 + $0xe0] sm:$0xff]
      %v299 = vld [vmem:[%s248 + $0xe8] sm:$0xff]
      %v300 = vld [vmem:[%s248 + $0xf0] sm:$0xff]
      %v301 = vld [vmem:[%s248 + $0xf8] sm:$0xff]
      %v302 = vld [vmem:[%s248 + $0x100] sm:$0xff]
      %v303 = vld [vmem:[%s248 + $0x108] sm:$0xff]
      %v304 = vld [vmem:[%s248 + $0x110] sm:$0xff]
      %v305 = vld [vmem:[%s248 + $0x118] sm:$0xff]
      %v306 = vld [vmem:[%s248 + $0x120] sm:$0xff]
      %v307 = vld [vmem:[%s248 + $0x128] sm:$0xff]
      %v308 = vld [vmem:[%s248 + $0x130] sm:$0xff]
      %v309 = vld [vmem:[%s248 + $0x138] sm:$0xff]
      %v310 = vld [vmem:[%s248 + $0x140] sm:$0xff]
      %v311 = vld [vmem:[%s248 + $0x148] sm:$0xff]
      %v312 = vld [vmem:[%s248 + $0x150] sm:$0xff]
      %v313 = vld [vmem:[%s248 + $0x158] sm:$0xff]
      %v314 = vld [vmem:[%s248 + $0x160] sm:$0xff]
      %v315 = vld [vmem:[%s248 + $0x168] sm:$0xff]
      %v316 = vld [vmem:[%s248 + $0x170] sm:$0xff]
      %v317 = vld [vmem:[%s248 + $0x178] sm:$0xff]
      %v318 = vld [vmem:[%s248 + $0x180] sm:$0xff]
      %v319 = vld [vmem:[%s248 + $0x188] sm:$0xff]
      %v320 = vld [vmem:[%s248 + $0x190] sm:$0xff]
      %v321 = vld [vmem:[%s248 + $0x198] sm:$0xff]
      %v322 = vld [vmem:[%s248 + $0x1a0] sm:$0xff]
      %v323 = vld [vmem:[%s248 + $0x1a8] sm:$0xff]
      %v324 = vld [vmem:[%s248 + $0x1b0] sm:$0xff]
      %v325 = vld [vmem:[%s248 + $0x1b8] sm:$0xff]
      %v326 = vld [vmem:[%s248 + $0x1c0] sm:$0xff]
      %v327 = vld [vmem:[%s248 + $0x1c8] sm:$0xff]
      %v328 = vld [vmem:[%s248 + $0x1d0] sm:$0xff]
      %v329 = vld [vmem:[%s248 + $0x1d8] sm:$0xff]
      %v330 = vld [vmem:[%s248 + $0x1e0] sm:$0xff]
      %v331 = vld [vmem:[%s248 + $0x1e8] sm:$0xff]
      %v332 = vld [vmem:[%s248 + $0x1f0] sm:$0xff]
      %v333 = vld [vmem:[%s248 + $0x1f8] sm:$0xff]
      %v334 = vld [vmem:[%s253] sm:$0xf]
      %v335 = vld [vmem:[%s253 + $0x4] sm:$0xf]
      %v336 = vld [vmem:[%s253 + $0x8] sm:$0xf]
      %v337 = vld [vmem:[%s253 + $0xc] sm:$0xf]
      %v338 = vld [vmem:[%s253 + $0x10] sm:$0xf]
      %v339 = vld [vmem:[%s253 + $0x14] sm:$0xf]
      %v340 = vld [vmem:[%s253 + $0x18] sm:$0xf]
      %v341 = vld [vmem:[%s253 + $0x1c] sm:$0xf]
      %v342 = vld [vmem:[%s253 + $0x20] sm:$0xf]
      %v343 = vld [vmem:[%s253 + $0x24] sm:$0xf]
      %v344 = vld [vmem:[%s253 + $0x28] sm:$0xf]
      %v345 = vld [vmem:[%s253 + $0x2c] sm:$0xf]
      %v346 = vld [vmem:[%s253 + $0x30] sm:$0xf]
      %v347 = vld [vmem:[%s253 + $0x34] sm:$0xf]
      %v348 = vld [vmem:[%s253 + $0x38] sm:$0xf]
      %v349 = vld [vmem:[%s253 + $0x3c] sm:$0xf]
      %v350 = vld [vmem:[%s253 + $0x40] sm:$0xf]
      %v351 = vld [vmem:[%s253 + $0x44] sm:$0xf]
      %v352 = vld [vmem:[%s253 + $0x48] sm:$0x3]
      %v417 = vunpack.c.l.b16 %v270
      %v418 = vunpack.c.h.b16 %v270
      %v419 = vunpack.c.l.b16 %v271
      %v420 = vunpack.c.h.b16 %v271
      %v421 = vunpack.c.l.b16 %v272
      %v422 = vunpack.c.h.b16 %v272
      %v423 = vunpack.c.l.b16 %v273
      %v424 = vunpack.c.h.b16 %v273
      %v425 = vunpack.c.l.b16 %v274
      %v426 = vunpack.c.h.b16 %v274
      %v427 = vunpack.c.l.b16 %v275
      %v428 = vunpack.c.h.b16 %v275
      %v429 = vunpack.c.l.b16 %v276
      %v430 = vunpack.c.h.b16 %v276
      %v431 = vunpack.c.l.b16 %v277
      %v432 = vunpack.c.h.b16 %v277
      %v433 = vunpack.c.l.b16 %v278
      %v434 = vunpack.c.h.b16 %v278
      %v435 = vunpack.c.l.b16 %v279
      %v436 = vunpack.c.h.b16 %v279
      %v437 = vunpack.c.l.b16 %v280
      %v438 = vunpack.c.h.b16 %v280
      %v439 = vunpack.c.l.b16 %v281
      %v440 = vunpack.c.h.b16 %v281
      %v441 = vunpack.c.l.b16 %v282
      %v442 = vunpack.c.h.b16 %v282
      %v443 = vunpack.c.l.b16 %v283
      %v444 = vunpack.c.h.b16 %v283
      %v445 = vunpack.c.l.b16 %v284
      %v446 = vunpack.c.h.b16 %v284
      %v447 = vunpack.c.l.b16 %v285
      %v448 = vunpack.c.h.b16 %v285
      %v449 = vunpack.c.l.b16 %v286
      %v450 = vunpack.c.h.b16 %v286
      %v451 = vunpack.c.l.b16 %v287
      %v452 = vunpack.c.h.b16 %v287
      %v453 = vunpack.c.l.b16 %v288
      %v454 = vunpack.c.h.b16 %v288
      %v455 = vunpack.c.l.b16 %v289
      %v456 = vunpack.c.h.b16 %v289
      %v457 = vunpack.c.l.b16 %v290
      %v458 = vunpack.c.h.b16 %v290
      %v459 = vunpack.c.l.b16 %v291
      %v460 = vunpack.c.h.b16 %v291
      %v461 = vunpack.c.l.b16 %v292
      %v462 = vunpack.c.h.b16 %v292
      %v463 = vunpack.c.l.b16 %v293
      %v464 = vunpack.c.h.b16 %v293
      %v465 = vunpack.c.l.b16 %v294
      %v466 = vunpack.c.h.b16 %v294
      %v467 = vunpack.c.l.b16 %v295
      %v468 = vunpack.c.h.b16 %v295
      %v469 = vunpack.c.l.b16 %v296
      %v470 = vunpack.c.h.b16 %v296
      %v471 = vunpack.c.l.b16 %v297
      %v472 = vunpack.c.h.b16 %v297
      %v473 = vunpack.c.l.b16 %v298
      %v474 = vunpack.c.h.b16 %v298
      %v475 = vunpack.c.l.b16 %v299
      %v476 = vunpack.c.h.b16 %v299
      %v477 = vunpack.c.l.b16 %v300
      %v478 = vunpack.c.h.b16 %v300
      %v479 = vunpack.c.l.b16 %v301
      %v480 = vunpack.c.h.b16 %v301
      %v481 = vunpack.c.l.b16 %v302
      %v482 = vunpack.c.h.b16 %v302
      %v483 = vunpack.c.l.b16 %v303
      %v484 = vunpack.c.h.b16 %v303
      %v485 = vunpack.c.l.b16 %v304
      %v486 = vunpack.c.h.b16 %v304
      %v487 = vunpack.c.l.b16 %v305
      %v488 = vunpack.c.h.b16 %v305
      %v489 = vunpack.c.l.b16 %v306
      %v490 = vunpack.c.h.b16 %v306
      %v491 = vunpack.c.l.b16 %v307
      %v492 = vunpack.c.h.b16 %v307
      %v493 = vunpack.c.l.b16 %v308
      %v494 = vunpack.c.h.b16 %v308
      %v495 = vunpack.c.l.b16 %v309
      %v496 = vunpack.c.h.b16 %v309
      %v497 = vunpack.c.l.b16 %v310
      %v498 = vunpack.c.h.b16 %v310
      %v499 = vunpack.c.l.b16 %v311
      %v500 = vunpack.c.h.b16 %v311
      %v501 = vunpack.c.l.b16 %v312
      %v502 = vunpack.c.h.b16 %v312
      %v503 = vunpack.c.l.b16 %v313
      %v504 = vunpack.c.h.b16 %v313
      %v505 = vunpack.c.l.b16 %v314
      %v506 = vunpack.c.h.b16 %v314
      %v507 = vunpack.c.l.b16 %v315
      %v508 = vunpack.c.h.b16 %v315
      %v509 = vunpack.c.l.b16 %v316
      %v510 = vunpack.c.h.b16 %v316
      %v511 = vunpack.c.l.b16 %v317
      %v512 = vunpack.c.h.b16 %v317
      %v513 = vunpack.c.l.b16 %v318
      %v514 = vunpack.c.h.b16 %v318
      %v515 = vunpack.c.l.b16 %v319
      %v516 = vunpack.c.h.b16 %v319
      %v517 = vunpack.c.l.b16 %v320
      %v518 = vunpack.c.h.b16 %v320
      %v519 = vunpack.c.l.b16 %v321
      %v520 = vunpack.c.h.b16 %v321
      %v521 = vunpack.c.l.b16 %v322
      %v522 = vunpack.c.h.b16 %v322
      %v523 = vunpack.c.l.b16 %v323
      %v524 = vunpack.c.h.b16 %v323
      %v525 = vunpack.c.l.b16 %v324
      %v526 = vunpack.c.h.b16 %v324
      %v527 = vunpack.c.l.b16 %v325
      %v528 = vunpack.c.h.b16 %v325
      %v529 = vunpack.c.l.b16 %v326
      %v530 = vunpack.c.h.b16 %v326
      %v531 = vunpack.c.l.b16 %v327
      %v532 = vunpack.c.h.b16 %v327
      %v533 = vunpack.c.l.b16 %v328
      %v534 = vunpack.c.h.b16 %v328
      %v535 = vunpack.c.l.b16 %v329
      %v536 = vunpack.c.h.b16 %v329
      %v537 = vunpack.c.l.b16 %v330
      %v538 = vunpack.c.h.b16 %v330
      %v539 = vunpack.c.l.b16 %v331
      %v540 = vunpack.c.h.b16 %v331
      %v541 = vunpack.c.l.b16 %v332
      %v542 = vunpack.c.h.b16 %v332
      %v543 = vunpack.c.l.b16 %v333
      %v544 = vunpack.c.h.b16 %v333
      %v545 = vpack.c.b16 %v419, %v417
      %v546 = vpack.c.b16 %v420, %v418
      %v547 = vpack.c.b16 %v423, %v421
      %v548 = vpack.c.b16 %v424, %v422
      %v549 = vpack.c.b16 %v427, %v425
      %v550 = vpack.c.b16 %v428, %v426
      %v551 = vpack.c.b16 %v431, %v429
      %v552 = vpack.c.b16 %v432, %v430
      %v553 = vpack.c.b16 %v435, %v433
      %v554 = vpack.c.b16 %v436, %v434
      %v555 = vpack.c.b16 %v439, %v437
      %v556 = vpack.c.b16 %v440, %v438
      %v557 = vpack.c.b16 %v443, %v441
      %v558 = vpack.c.b16 %v444, %v442
      %v559 = vpack.c.b16 %v447, %v445
      %v560 = vpack.c.b16 %v448, %v446
      %v561 = vpack.c.b16 %v451, %v449
      %v562 = vpack.c.b16 %v452, %v450
      %v563 = vpack.c.b16 %v455, %v453
      %v564 = vpack.c.b16 %v456, %v454
      %v565 = vpack.c.b16 %v459, %v457
      %v566 = vpack.c.b16 %v460, %v458
      %v567 = vpack.c.b16 %v463, %v461
      %v568 = vpack.c.b16 %v464, %v462
      %v569 = vpack.c.b16 %v467, %v465
      %v570 = vpack.c.b16 %v468, %v466
      %v571 = vpack.c.b16 %v471, %v469
      %v572 = vpack.c.b16 %v472, %v470
      %v573 = vpack.c.b16 %v475, %v473
      %v574 = vpack.c.b16 %v476, %v474
      %v575 = vpack.c.b16 %v479, %v477
      %v576 = vpack.c.b16 %v480, %v478
      %v577 = vpack.c.b16 %v483, %v481
      %v578 = vpack.c.b16 %v484, %v482
      %v579 = vpack.c.b16 %v487, %v485
      %v580 = vpack.c.b16 %v488, %v486
      %v581 = vpack.c.b16 %v491, %v489
      %v582 = vpack.c.b16 %v492, %v490
      %v583 = vpack.c.b16 %v495, %v493
      %v584 = vpack.c.b16 %v496, %v494
      %v585 = vpack.c.b16 %v499, %v497
      %v586 = vpack.c.b16 %v500, %v498
      %v587 = vpack.c.b16 %v503, %v501
      %v588 = vpack.c.b16 %v504, %v502
      %v589 = vpack.c.b16 %v507, %v505
      %v590 = vpack.c.b16 %v508, %v506
      %v591 = vpack.c.b16 %v511, %v509
      %v592 = vpack.c.b16 %v512, %v510
      %v593 = vpack.c.b16 %v515, %v513
      %v594 = vpack.c.b16 %v516, %v514
      %v595 = vpack.c.b16 %v519, %v517
      %v596 = vpack.c.b16 %v520, %v518
      %v597 = vpack.c.b16 %v523, %v521
      %v598 = vpack.c.b16 %v524, %v522
      %v599 = vpack.c.b16 %v527, %v525
      %v600 = vpack.c.b16 %v528, %v526
      %v601 = vpack.c.b16 %v531, %v529
      %v602 = vpack.c.b16 %v532, %v530
      %v603 = vpack.c.b16 %v535, %v533
      %v604 = vpack.c.b16 %v536, %v534
      %v605 = vpack.c.b16 %v539, %v537
      %v606 = vpack.c.b16 %v540, %v538
      %v607 = vpack.c.b16 %v543, %v541
      %v608 = vpack.c.b16 %v544, %v542
      %v660 = vunpack.c.l.b16 %v334
      %v661 = vunpack.c.l.b16 %v335
      %v662 = vunpack.c.l.b16 %v336
      %v663 = vunpack.c.l.b16 %v337
      %v664 = vunpack.c.l.b16 %v338
      %v665 = vunpack.c.l.b16 %v339
      %v666 = vunpack.c.l.b16 %v340
      %v667 = vunpack.c.l.b16 %v341
      %v668 = vunpack.c.l.b16 %v342
      %v669 = vunpack.c.l.b16 %v343
      %v670 = vunpack.c.l.b16 %v344
      %v671 = vunpack.c.l.b16 %v345
      %v672 = vunpack.c.l.b16 %v346
      %v673 = vunpack.c.l.b16 %v347
      %v674 = vunpack.c.l.b16 %v348
      %v675 = vunpack.c.l.b16 %v349
      %v676 = vunpack.c.l.b16 %v350
      %v677 = vunpack.c.l.b16 %v351
      %v678 = vunpack.c.l.b16 %v352
      %v679 = vpack.c.b16 %v661, %v660
      %v680 = vpack.c.b16 %v663, %v662
      %v681 = vpack.c.b16 %v665, %v664
      %v682 = vpack.c.b16 %v667, %v666
      %v683 = vpack.c.b16 %v669, %v668
      %v684 = vpack.c.b16 %v671, %v670
      %v685 = vpack.c.b16 %v673, %v672
      %v686 = vpack.c.b16 %v675, %v674
      %v687 = vpack.c.b16 %v677, %v676
      %v688 = vpack.c.b16 %v678, %v678
      %vm698 = vcmask 154624
      %v700 = vsel %vm698, %v546, 0
      %v703 = vsel %vm698, %v548, 0
      %v706 = vsel %vm698, %v550, 0
      %v709 = vsel %vm698, %v552, 0
      %v712 = vsel %vm698, %v554, 0
      %v715 = vsel %vm698, %v556, 0
      %v718 = vsel %vm698, %v558, 0
      %v721 = vsel %vm698, %v560, 0
      %v724 = vsel %vm698, %v562, 0
      %v727 = vsel %vm698, %v564, 0
      %v730 = vsel %vm698, %v566, 0
      %v733 = vsel %vm698, %v568, 0
      %v736 = vsel %vm698, %v570, 0
      %v739 = vsel %vm698, %v572, 0
      %v742 = vsel %vm698, %v574, 0
      %v745 = vsel %vm698, %v576, 0
      %v748 = vsel %vm698, %v578, 0
      %v751 = vsel %vm698, %v580, 0
      %v754 = vsel %vm698, %v582, 0
      %v757 = vsel %vm698, %v584, 0
      %v760 = vsel %vm698, %v586, 0
      %v763 = vsel %vm698, %v588, 0
      %v766 = vsel %vm698, %v590, 0
      %v769 = vsel %vm698, %v592, 0
      %v772 = vsel %vm698, %v594, 0
      %v775 = vsel %vm698, %v596, 0
      %v778 = vsel %vm698, %v598, 0
      %v781 = vsel %vm698, %v600, 0
      %v784 = vsel %vm698, %v602, 0
      %v787 = vsel %vm698, %v604, 0
      %v790 = vsel %vm698, %v606, 0
      %v793 = vsel %vm698, %v608, 0
      %vm795 = vcmask 1040384
      %vm796 = vcmask 1041408
      %v797 = vsel %vm795, 4294967295, 65535
      %v798 = vsel %vm796, %v797, 0
      %v800 = vand.u32 %v688, %v798
      %802 = vmatprep.subr.bf16.mxu0 0
      %803 = vmatpush1.bf16.msra.mxu0 %v679
      %804 = vmatprep.subr.bf16.mxu0 0
      %805 = vmatpush1.bf16.msra.mxu0 %v680
      %806 = vmatprep.subr.bf16.mxu0 0
      %807 = vmatpush1.bf16.msra.mxu0 %v681
      %808 = vmatprep.subr.bf16.mxu0 0
      %809 = vmatpush1.bf16.msra.mxu0 %v682
      %810 = vmatprep.subr.bf16.mxu0 0
      %811 = vmatpush1.bf16.msra.mxu0 %v683
      %812 = vmatprep.subr.bf16.mxu0 0
      %813 = vmatpush1.bf16.msra.mxu0 %v684
      %814 = vmatprep.subr.bf16.mxu0 0
      %815 = vmatpush1.bf16.msra.mxu0 %v685
      %816 = vmatprep.subr.bf16.mxu0 0
      %817 = vmatpush1.bf16.msra.mxu0 %v686
      %818 = vmatprep.subr.bf16.mxu0 0
      %819 = vmatpush1.bf16.msra.mxu0 %v687
      %820 = vmatprep.subr.bf16.mxu0 0
      %821 = vmatpush1.bf16.msra.mxu0 %v800
      %822 = vmatprep.subr.bf16.mxu0 0
      %823 = vmatpush1.bf16.msra.mxu0 0
      %824 = vmatprep.subr.bf16.mxu0 0
      %825 = vmatpush1.bf16.msra.mxu0 0
      %826 = vmatprep.subr.bf16.mxu0 0
      %827 = vmatpush1.bf16.msra.mxu0 0
      %828 = vmatprep.subr.bf16.mxu0 0
      %829 = vmatpush1.bf16.msra.mxu0 0
      %830 = vmatprep.subr.bf16.mxu0 0
      %831 = vmatpush1.bf16.msra.mxu0 0
      %832 = vmatprep.subr.bf16.mxu0 0
      %833 = vmatpush1.bf16.msra.mxu0 0
      %834 = vmatprep.mubr.bf16.mxu0 %v700
      %835 = vmatmul.mubr.bf16.gmra.mrb[0].mxu0 %v545
      %v836 = vpop.f32.mrb[0].mxu0
      %v837 = vadd.f32 0.0, %v836
      %v838 = vpop.f32.mrb[0].mxu0
      %v839 = vpop.f32.mrb[0].mxu0
      %v840 = vadd.f32 0.0, %v839
      %v841 = vpop.f32.mrb[0].mxu0
      %842 = vmatprep.mubr.bf16.mxu0 %v703
      %843 = vmatmul.mubr.bf16.gmra.mrb[0].mxu0 %v547
      %v844 = vpop.f32.mrb[0].mxu0
      %v845 = vadd.f32 0.0, %v844
      %v846 = vpop.f32.mrb[0].mxu0
      %v847 = vpop.f32.mrb[0].mxu0
      %v848 = vadd.f32 0.0, %v847
      %v849 = vpop.f32.mrb[0].mxu0
      %850 = vmatprep.mubr.bf16.mxu0 %v706
      %851 = vmatmul.mubr.bf16.gmra.mrb[0].mxu0 %v549
      %v852 = vpop.f32.mrb[0].mxu0
      %v853 = vadd.f32 0.0, %v852
      %v854 = vpop.f32.mrb[0].mxu0
      %v855 = vpop.f32.mrb[0].mxu0
      %v856 = vadd.f32 0.0, %v855
      %v857 = vpop.f32.mrb[0].mxu0
      %858 = vmatprep.mubr.bf16.mxu0 %v709
      %859 = vmatmul.mubr.bf16.gmra.mrb[0].mxu0 %v551
      %v860 = vpop.f32.mrb[0].mxu0
      %v861 = vadd.f32 0.0, %v860
      %v862 = vpop.f32.mrb[0].mxu0
      %v863 = vpop.f32.mrb[0].mxu0
      %v864 = vadd.f32 0.0, %v863
      %v865 = vpop.f32.mrb[0].mxu0
      %866 = vmatprep.mubr.bf16.mxu0 %v712
      %867 = vmatmul.mubr.bf16.gmra.mrb[0].mxu0 %v553
      %v868 = vpop.f32.mrb[0].mxu0
      %v869 = vadd.f32 0.0, %v868
      %v870 = vpop.f32.mrb[0].mxu0
      %v871 = vpop.f32.mrb[0].mxu0
      %v872 = vadd.f32 0.0, %v871
      %v873 = vpop.f32.mrb[0].mxu0
      %874 = vmatprep.mubr.bf16.mxu0 %v715
      %875 = vmatmul.mubr.bf16.gmra.mrb[0].mxu0 %v555
      %v876 = vpop.f32.mrb[0].mxu0
      %v877 = vadd.f32 0.0, %v876
      %v878 = vpop.f32.mrb[0].mxu0
      %v879 = vpop.f32.mrb[0].mxu0
      %v880 = vadd.f32 0.0, %v879
      %v881 = vpop.f32.mrb[0].mxu0
      %882 = vmatprep.mubr.bf16.mxu0 %v718
      %883 = vmatmul.mubr.bf16.gmra.mrb[0].mxu0 %v557
      %v884 = vpop.f32.mrb[0].mxu0
      %v885 = vadd.f32 0.0, %v884
      %v886 = vpop.f32.mrb[0].mxu0
      %v887 = vpop.f32.mrb[0].mxu0
      %v888 = vadd.f32 0.0, %v887
      %v889 = vpop.f32.mrb[0].mxu0
      %890 = vmatprep.mubr.bf16.mxu0 %v721
      %891 = vmatmul.mubr.bf16.gmra.mrb[0].mxu0 %v559
      %v892 = vpop.f32.mrb[0].mxu0
      %v893 = vadd.f32 0.0, %v892
      %v894 = vpop.f32.mrb[0].mxu0
      %v895 = vpop.f32.mrb[0].mxu0
      %v896 = vadd.f32 0.0, %v895
      %v897 = vpop.f32.mrb[0].mxu0
      %898 = vmatprep.mubr.bf16.mxu0 %v724
      %899 = vmatmul.mubr.bf16.gmra.mrb[0].mxu0 %v561
      %v900 = vpop.f32.mrb[0].mxu0
      %v901 = vadd.f32 0.0, %v900
      %v902 = vpop.f32.mrb[0].mxu0
      %v903 = vpop.f32.mrb[0].mxu0
      %v904 = vadd.f32 0.0, %v903
      %v905 = vpop.f32.mrb[0].mxu0
      %906 = vmatprep.mubr.bf16.mxu0 %v727
      %907 = vmatmul.mubr.bf16.gmra.mrb[0].mxu0 %v563
      %v908 = vpop.f32.mrb[0].mxu0
      %v909 = vadd.f32 0.0, %v908
      %v910 = vpop.f32.mrb[0].mxu0
      %v911 = vpop.f32.mrb[0].mxu0
      %v912 = vadd.f32 0.0, %v911
      %v913 = vpop.f32.mrb[0].mxu0
      %914 = vmatprep.mubr.bf16.mxu0 %v730
      %915 = vmatmul.mubr.bf16.gmra.mrb[0].mxu0 %v565
      %v916 = vpop.f32.mrb[0].mxu0
      %v917 = vadd.f32 0.0, %v916
      %v918 = vpop.f32.mrb[0].mxu0
      %v919 = vpop.f32.mrb[0].mxu0
      %v920 = vadd.f32 0.0, %v919
      %v921 = vpop.f32.mrb[0].mxu0
      %922 = vmatprep.mubr.bf16.mxu0 %v733
      %923 = vmatmul.mubr.bf16.gmra.mrb[0].mxu0 %v567
      %v924 = vpop.f32.mrb[0].mxu0
      %v925 = vadd.f32 0.0, %v924
      %v926 = vpop.f32.mrb[0].mxu0
      %v927 = vpop.f32.mrb[0].mxu0
      %v928 = vadd.f32 0.0, %v927
      %v929 = vpop.f32.mrb[0].mxu0
      %930 = vmatprep.mubr.bf16.mxu0 %v736
      %931 = vmatmul.mubr.bf16.gmra.mrb[0].mxu0 %v569
      %v932 = vpop.f32.mrb[0].mxu0
      %v933 = vadd.f32 0.0, %v932
      %v934 = vpop.f32.mrb[0].mxu0
      %v935 = vpop.f32.mrb[0].mxu0
      %v936 = vadd.f32 0.0, %v935
      %v937 = vpop.f32.mrb[0].mxu0
      %938 = vmatprep.mubr.bf16.mxu0 %v739
      %939 = vmatmul.mubr.bf16.gmra.mrb[0].mxu0 %v571
      %v940 = vpop.f32.mrb[0].mxu0
      %v941 = vadd.f32 0.0, %v940
      %v942 = vpop.f32.mrb[0].mxu0
      %v943 = vpop.f32.mrb[0].mxu0
      %v944 = vadd.f32 0.0, %v943
      %v945 = vpop.f32.mrb[0].mxu0
      %946 = vmatprep.mubr.bf16.mxu0 %v742
      %947 = vmatmul.mubr.bf16.gmra.mrb[0].mxu0 %v573
      %v948 = vpop.f32.mrb[0].mxu0
      %v949 = vadd.f32 0.0, %v948
      %v950 = vpop.f32.mrb[0].mxu0
      %v951 = vpop.f32.mrb[0].mxu0
      %v952 = vadd.f32 0.0, %v951
      %v953 = vpop.f32.mrb[0].mxu0
      %954 = vmatprep.mubr.bf16.mxu0 %v745
      %955 = vmatmul.mubr.bf16.gmra.mrb[0].mxu0 %v575
      %v956 = vpop.f32.mrb[0].mxu0
      %v957 = vadd.f32 0.0, %v956
      %v958 = vpop.f32.mrb[0].mxu0
      %v959 = vpop.f32.mrb[0].mxu0
      %v960 = vadd.f32 0.0, %v959
      %v961 = vpop.f32.mrb[0].mxu0
      %962 = vmatprep.mubr.bf16.mxu0 %v748
      %963 = vmatmul.mubr.bf16.gmra.mrb[0].mxu0 %v577
      %v964 = vpop.f32.mrb[0].mxu0
      %v965 = vadd.f32 0.0, %v964
      %v966 = vpop.f32.mrb[0].mxu0
      %v967 = vpop.f32.mrb[0].mxu0
      %v968 = vadd.f32 0.0, %v967
      %v969 = vpop.f32.mrb[0].mxu0
      %970 = vmatprep.mubr.bf16.mxu0 %v751
      %971 = vmatmul.mubr.bf16.gmra.mrb[0].mxu0 %v579
      %v972 = vpop.f32.mrb[0].mxu0
      %v973 = vadd.f32 0.0, %v972
      %v974 = vpop.f32.mrb[0].mxu0
      %v975 = vpop.f32.mrb[0].mxu0
      %v976 = vadd.f32 0.0, %v975
      %v977 = vpop.f32.mrb[0].mxu0
      %978 = vmatprep.mubr.bf16.mxu0 %v754
      %979 = vmatmul.mubr.bf16.gmra.mrb[0].mxu0 %v581
      %v980 = vpop.f32.mrb[0].mxu0
      %v981 = vadd.f32 0.0, %v980
      %v982 = vpop.f32.mrb[0].mxu0
      %v983 = vpop.f32.mrb[0].mxu0
      %v984 = vadd.f32 0.0, %v983
      %v985 = vpop.f32.mrb[0].mxu0
      %986 = vmatprep.mubr.bf16.mxu0 %v757
      %987 = vmatmul.mubr.bf16.gmra.mrb[0].mxu0 %v583
      %v988 = vpop.f32.mrb[0].mxu0
      %v989 = vadd.f32 0.0, %v988
      %v990 = vpop.f32.mrb[0].mxu0
      %v991 = vpop.f32.mrb[0].mxu0
      %v992 = vadd.f32 0.0, %v991
      %v993 = vpop.f32.mrb[0].mxu0
      %994 = vmatprep.mubr.bf16.mxu0 %v760
      %995 = vmatmul.mubr.bf16.gmra.mrb[0].mxu0 %v585
      %v996 = vpop.f32.mrb[0].mxu0
      %v997 = vadd.f32 0.0, %v996
      %v998 = vpop.f32.mrb[0].mxu0
      %v999 = vpop.f32.mrb[0].mxu0
      %v1000 = vadd.f32 0.0, %v999
      %v1001 = vpop.f32.mrb[0].mxu0
      %1002 = vmatprep.mubr.bf16.mxu0 %v763
      %1003 = vmatmul.mubr.bf16.gmra.mrb[0].mxu0 %v587
      %v1004 = vpop.f32.mrb[0].mxu0
      %v1005 = vadd.f32 0.0, %v1004
      %v1006 = vpop.f32.mrb[0].mxu0
      %v1007 = vpop.f32.mrb[0].mxu0
      %v1008 = vadd.f32 0.0, %v1007
      %v1009 = vpop.f32.mrb[0].mxu0
      %1010 = vmatprep.mubr.bf16.mxu0 %v766
      %1011 = vmatmul.mubr.bf16.gmra.mrb[0].mxu0 %v589
      %v1012 = vpop.f32.mrb[0].mxu0
      %v1013 = vadd.f32 0.0, %v1012
      %v1014 = vpop.f32.mrb[0].mxu0
      %v1015 = vpop.f32.mrb[0].mxu0
      %v1016 = vadd.f32 0.0, %v1015
      %v1017 = vpop.f32.mrb[0].mxu0
      %1018 = vmatprep.mubr.bf16.mxu0 %v769
      %1019 = vmatmul.mubr.bf16.gmra.mrb[0].mxu0 %v591
      %v1020 = vpop.f32.mrb[0].mxu0
      %v1021 = vadd.f32 0.0, %v1020
      %v1022 = vpop.f32.mrb[0].mxu0
      %v1023 = vpop.f32.mrb[0].mxu0
      %v1024 = vadd.f32 0.0, %v1023
      %v1025 = vpop.f32.mrb[0].mxu0
      %1026 = vmatprep.mubr.bf16.mxu0 %v772
      %1027 = vmatmul.mubr.bf16.gmra.mrb[0].mxu0 %v593
      %v1028 = vpop.f32.mrb[0].mxu0
      %v1029 = vadd.f32 0.0, %v1028
      %v1030 = vpop.f32.mrb[0].mxu0
      %v1031 = vpop.f32.mrb[0].mxu0
      %v1032 = vadd.f32 0.0, %v1031
      %v1033 = vpop.f32.mrb[0].mxu0
      %1034 = vmatprep.mubr.bf16.mxu0 %v775
      %1035 = vmatmul.mubr.bf16.gmra.mrb[0].mxu0 %v595
      %v1036 = vpop.f32.mrb[0].mxu0
      %v1037 = vadd.f32 0.0, %v1036
      %v1038 = vpop.f32.mrb[0].mxu0
      %v1039 = vpop.f32.mrb[0].mxu0
      %v1040 = vadd.f32 0.0, %v1039
      %v1041 = vpop.f32.mrb[0].mxu0
      %1042 = vmatprep.mubr.bf16.mxu0 %v778
      %1043 = vmatmul.mubr.bf16.gmra.mrb[0].mxu0 %v597
      %v1044 = vpop.f32.mrb[0].mxu0
      %v1045 = vadd.f32 0.0, %v1044
      %v1046 = vpop.f32.mrb[0].mxu0
      %v1047 = vpop.f32.mrb[0].mxu0
      %v1048 = vadd.f32 0.0, %v1047
      %v1049 = vpop.f32.mrb[0].mxu0
      %1050 = vmatprep.mubr.bf16.mxu0 %v781
      %1051 = vmatmul.mubr.bf16.gmra.mrb[0].mxu0 %v599
      %v1052 = vpop.f32.mrb[0].mxu0
      %v1053 = vadd.f32 0.0, %v1052
      %v1054 = vpop.f32.mrb[0].mxu0
      %v1055 = vpop.f32.mrb[0].mxu0
      %v1056 = vadd.f32 0.0, %v1055
      %v1057 = vpop.f32.mrb[0].mxu0
      %1058 = vmatprep.mubr.bf16.mxu0 %v784
      %1059 = vmatmul.mubr.bf16.gmra.mrb[0].mxu0 %v601
      %v1060 = vpop.f32.mrb[0].mxu0
      %v1061 = vadd.f32 0.0, %v1060
      %v1062 = vpop.f32.mrb[0].mxu0
      %v1063 = vpop.f32.mrb[0].mxu0
      %v1064 = vadd.f32 0.0, %v1063
      %v1065 = vpop.f32.mrb[0].mxu0
      %1066 = vmatprep.mubr.bf16.mxu0 %v787
      %1067 = vmatmul.mubr.bf16.gmra.mrb[0].mxu0 %v603
      %v1068 = vpop.f32.mrb[0].mxu0
      %v1069 = vadd.f32 0.0, %v1068
      %v1070 = vpop.f32.mrb[0].mxu0
      %v1071 = vpop.f32.mrb[0].mxu0
      %v1072 = vadd.f32 0.0, %v1071
      %v1073 = vpop.f32.mrb[0].mxu0
      %1074 = vmatprep.mubr.bf16.mxu0 %v790
      %1075 = vmatmul.mubr.bf16.gmra.mrb[0].mxu0 %v605
      %v1076 = vpop.f32.mrb[0].mxu0
      %v1077 = vadd.f32 0.0, %v1076
      %v1078 = vpop.f32.mrb[0].mxu0
      %v1079 = vpop.f32.mrb[0].mxu0
      %v1080 = vadd.f32 0.0, %v1079
      %v1081 = vpop.f32.mrb[0].mxu0
      %1082 = vmatprep.mubr.bf16.mxu0 %v793
      %1083 = vmatmul.mubr.bf16.gmra.mrb[0].mxu0 %v607
      %v1084 = vpop.f32.mrb[0].mxu0
      %v1085 = vadd.f32 0.0, %v1084
      %v1086 = vpop.f32.mrb[0].mxu0
      %v1087 = vpop.f32.mrb[0].mxu0
      %v1088 = vadd.f32 0.0, %v1087
      %v1089 = vpop.f32.mrb[0].mxu0
      %1090 = vdwg.mxu0
      %v1091 = vld [vmem:[%s256] sm:$0x1]
      %v1093 = vlaneseq
      %v1094 = vshrl.u32 %v1093, 7
      %v1095 = vsub.s32 0, %v1094
      %v1096 = vrot.slane %v1091, %v1095
      %v1098 = vmul.f32 %v837, %v1096
      %v1099 = vmul.f32 %v840, %v1096
      %v1100 = vmul.f32 %v845, %v1096
      %v1101 = vmul.f32 %v848, %v1096
      %v1102 = vmul.f32 %v853, %v1096
      %v1103 = vmul.f32 %v856, %v1096
      %v1104 = vmul.f32 %v861, %v1096
      %v1105 = vmul.f32 %v864, %v1096
      %v1106 = vmul.f32 %v869, %v1096
      %v1107 = vmul.f32 %v872, %v1096
      %v1108 = vmul.f32 %v877, %v1096
      %v1109 = vmul.f32 %v880, %v1096
      %v1110 = vmul.f32 %v885, %v1096
      %v1111 = vmul.f32 %v888, %v1096
      %v1112 = vmul.f32 %v893, %v1096
      %v1113 = vmul.f32 %v896, %v1096
      %v1114 = vmul.f32 %v901, %v1096
      %v1115 = vmul.f32 %v904, %v1096
      %v1116 = vmul.f32 %v909, %v1096
      %v1117 = vmul.f32 %v912, %v1096
      %v1118 = vmul.f32 %v917, %v1096
      %v1119 = vmul.f32 %v920, %v1096
      %v1120 = vmul.f32 %v925, %v1096
      %v1121 = vmul.f32 %v928, %v1096
      %v1122 = vmul.f32 %v933, %v1096
      %v1123 = vmul.f32 %v936, %v1096
      %v1124 = vmul.f32 %v941, %v1096
      %v1125 = vmul.f32 %v944, %v1096
      %v1126 = vmul.f32 %v949, %v1096
      %v1127 = vmul.f32 %v952, %v1096
      %v1128 = vmul.f32 %v957, %v1096
      %v1129 = vmul.f32 %v960, %v1096
      %v1130 = vmul.f32 %v965, %v1096
      %v1131 = vmul.f32 %v968, %v1096
      %v1132 = vmul.f32 %v973, %v1096
      %v1133 = vmul.f32 %v976, %v1096
      %v1134 = vmul.f32 %v981, %v1096
      %v1135 = vmul.f32 %v984, %v1096
      %v1136 = vmul.f32 %v989, %v1096
      %v1137 = vmul.f32 %v992, %v1096
      %v1138 = vmul.f32 %v997, %v1096
      %v1139 = vmul.f32 %v1000, %v1096
      %v1140 = vmul.f32 %v1005, %v1096
      %v1141 = vmul.f32 %v1008, %v1096
      %v1142 = vmul.f32 %v1013, %v1096
      %v1143 = vmul.f32 %v1016, %v1096
      %v1144 = vmul.f32 %v1021, %v1096
      %v1145 = vmul.f32 %v1024, %v1096
      %v1146 = vmul.f32 %v1029, %v1096
      %v1147 = vmul.f32 %v1032, %v1096
      %v1148 = vmul.f32 %v1037, %v1096
      %v1149 = vmul.f32 %v1040, %v1096
      %v1150 = vmul.f32 %v1045, %v1096
      %v1151 = vmul.f32 %v1048, %v1096
      %v1152 = vmul.f32 %v1053, %v1096
      %v1153 = vmul.f32 %v1056, %v1096
      %v1154 = vmul.f32 %v1061, %v1096
      %v1155 = vmul.f32 %v1064, %v1096
      %v1156 = vmul.f32 %v1069, %v1096
      %v1157 = vmul.f32 %v1072, %v1096
      %v1158 = vmul.f32 %v1077, %v1096
      %v1159 = vmul.f32 %v1080, %v1096
      %v1160 = vmul.f32 %v1085, %v1096
      %v1161 = vmul.f32 %v1088, %v1096
      %v1162 = vld [vmem:[%s259] sm:$0x1]
      %v1164 = vlaneseq
      %v1165 = vshrl.u32 %v1164, 7
      %v1166 = vsub.s32 0, %v1165
      %v1167 = vrot.slane %v1162, %v1166
      %v1169 = vadd.f32 %v1098, %v1167
      %v1170 = vadd.f32 %v1099, %v1167
      %v1171 = vadd.f32 %v1100, %v1167
      %v1172 = vadd.f32 %v1101, %v1167
      %v1173 = vadd.f32 %v1102, %v1167
      %v1174 = vadd.f32 %v1103, %v1167
      %v1175 = vadd.f32 %v1104, %v1167
      %v1176 = vadd.f32 %v1105, %v1167
      %v1177 = vadd.f32 %v1106, %v1167
      %v1178 = vadd.f32 %v1107, %v1167
      %v1179 = vadd.f32 %v1108, %v1167
      %v1180 = vadd.f32 %v1109, %v1167
      %v1181 = vadd.f32 %v1110, %v1167
      %v1182 = vadd.f32 %v1111, %v1167
      %v1183 = vadd.f32 %v1112, %v1167
      %v1184 = vadd.f32 %v1113, %v1167
      %v1185 = vadd.f32 %v1114, %v1167
      %v1186 = vadd.f32 %v1115, %v1167
      %v1187 = vadd.f32 %v1116, %v1167
      %v1188 = vadd.f32 %v1117, %v1167
      %v1189 = vadd.f32 %v1118, %v1167
      %v1190 = vadd.f32 %v1119, %v1167
      %v1191 = vadd.f32 %v1120, %v1167
      %v1192 = vadd.f32 %v1121, %v1167
      %v1193 = vadd.f32 %v1122, %v1167
      %v1194 = vadd.f32 %v1123, %v1167
      %v1195 = vadd.f32 %v1124, %v1167
      %v1196 = vadd.f32 %v1125, %v1167
      %v1197 = vadd.f32 %v1126, %v1167
      %v1198 = vadd.f32 %v1127, %v1167
      %v1199 = vadd.f32 %v1128, %v1167
      %v1200 = vadd.f32 %v1129, %v1167
      %v1201 = vadd.f32 %v1130, %v1167
      %v1202 = vadd.f32 %v1131, %v1167
      %v1203 = vadd.f32 %v1132, %v1167
      %v1204 = vadd.f32 %v1133, %v1167
      %v1205 = vadd.f32 %v1134, %v1167
      %v1206 = vadd.f32 %v1135, %v1167
      %v1207 = vadd.f32 %v1136, %v1167
      %v1208 = vadd.f32 %v1137, %v1167
      %v1209 = vadd.f32 %v1138, %v1167
      %v1210 = vadd.f32 %v1139, %v1167
      %v1211 = vadd.f32 %v1140, %v1167
      %v1212 = vadd.f32 %v1141, %v1167
      %v1213 = vadd.f32 %v1142, %v1167
      %v1214 = vadd.f32 %v1143, %v1167
      %v1215 = vadd.f32 %v1144, %v1167
      %v1216 = vadd.f32 %v1145, %v1167
      %v1217 = vadd.f32 %v1146, %v1167
      %v1218 = vadd.f32 %v1147, %v1167
      %v1219 = vadd.f32 %v1148, %v1167
      %v1220 = vadd.f32 %v1149, %v1167
      %v1221 = vadd.f32 %v1150, %v1167
      %v1222 = vadd.f32 %v1151, %v1167
      %v1223 = vadd.f32 %v1152, %v1167
      %v1224 = vadd.f32 %v1153, %v1167
      %v1225 = vadd.f32 %v1154, %v1167
      %v1226 = vadd.f32 %v1155, %v1167
      %v1227 = vadd.f32 %v1156, %v1167
      %v1228 = vadd.f32 %v1157, %v1167
      %v1229 = vadd.f32 %v1158, %v1167
      %v1230 = vadd.f32 %v1159, %v1167
      %v1231 = vadd.f32 %v1160, %v1167
      %v1232 = vadd.f32 %v1161, %v1167
      %v1233 = vmax.f32 %v1169, 0.0
      %v1234 = vmax.f32 %v1170, 0.0
      %v1235 = vmax.f32 %v1171, 0.0
      %v1236 = vmax.f32 %v1172, 0.0
      %v1237 = vmax.f32 %v1173, 0.0
      %v1238 = vmax.f32 %v1174, 0.0
      %v1239 = vmax.f32 %v1175, 0.0
      %v1240 = vmax.f32 %v1176, 0.0
      %v1241 = vmax.f32 %v1177, 0.0
      %v1242 = vmax.f32 %v1178, 0.0
      %v1243 = vmax.f32 %v1179, 0.0
      %v1244 = vmax.f32 %v1180, 0.0
      %v1245 = vmax.f32 %v1181, 0.0
      %v1246 = vmax.f32 %v1182, 0.0
      %v1247 = vmax.f32 %v1183, 0.0
      %v1248 = vmax.f32 %v1184, 0.0
      %v1249 = vmax.f32 %v1185, 0.0
      %v1250 = vmax.f32 %v1186, 0.0
      %v1251 = vmax.f32 %v1187, 0.0
      %v1252 = vmax.f32 %v1188, 0.0
      %v1253 = vmax.f32 %v1189, 0.0
      %v1254 = vmax.f32 %v1190, 0.0
      %v1255 = vmax.f32 %v1191, 0.0
      %v1256 = vmax.f32 %v1192, 0.0
      %v1257 = vmax.f32 %v1193, 0.0
      %v1258 = vmax.f32 %v1194, 0.0
      %v1259 = vmax.f32 %v1195, 0.0
      %v1260 = vmax.f32 %v1196, 0.0
      %v1261 = vmax.f32 %v1197, 0.0
      %v1262 = vmax.f32 %v1198, 0.0
      %v1263 = vmax.f32 %v1199, 0.0
      %v1264 = vmax.f32 %v1200, 0.0
      %v1265 = vmax.f32 %v1201, 0.0
      %v1266 = vmax.f32 %v1202, 0.0
      %v1267 = vmax.f32 %v1203, 0.0
      %v1268 = vmax.f32 %v1204, 0.0
      %v1269 = vmax.f32 %v1205, 0.0
      %v1270 = vmax.f32 %v1206, 0.0
      %v1271 = vmax.f32 %v1207, 0.0
      %v1272 = vmax.f32 %v1208, 0.0
      %v1273 = vmax.f32 %v1209, 0.0
      %v1274 = vmax.f32 %v1210, 0.0
      %v1275 = vmax.f32 %v1211, 0.0
      %v1276 = vmax.f32 %v1212, 0.0
      %v1277 = vmax.f32 %v1213, 0.0
      %v1278 = vmax.f32 %v1214, 0.0
      %v1279 = vmax.f32 %v1215, 0.0
      %v1280 = vmax.f32 %v1216, 0.0
      %v1281 = vmax.f32 %v1217, 0.0
      %v1282 = vmax.f32 %v1218, 0.0
      %v1283 = vmax.f32 %v1219, 0.0
      %v1284 = vmax.f32 %v1220, 0.0
      %v1285 = vmax.f32 %v1221, 0.0
      %v1286 = vmax.f32 %v1222, 0.0
      %v1287 = vmax.f32 %v1223, 0.0
      %v1288 = vmax.f32 %v1224, 0.0
      %v1289 = vmax.f32 %v1225, 0.0
      %v1290 = vmax.f32 %v1226, 0.0
      %v1291 = vmax.f32 %v1227, 0.0
      %v1292 = vmax.f32 %v1228, 0.0
      %v1293 = vmax.f32 %v1229, 0.0
      %v1294 = vmax.f32 %v1230, 0.0
      %v1295 = vmax.f32 %v1231, 0.0
      %v1296 = vmax.f32 %v1232, 0.0
      %v1297 = vpack.c.bf16 %v1234, %v1233
      %v1298 = vpack.c.bf16 %v1236, %v1235
      %v1299 = vpack.c.bf16 %v1238, %v1237
      %v1300 = vpack.c.bf16 %v1240, %v1239
      %v1301 = vpack.c.bf16 %v1242, %v1241
      %v1302 = vpack.c.bf16 %v1244, %v1243
      %v1303 = vpack.c.bf16 %v1246, %v1245
      %v1304 = vpack.c.bf16 %v1248, %v1247
      %v1305 = vpack.c.bf16 %v1250, %v1249
      %v1306 = vpack.c.bf16 %v1252, %v1251
      %v1307 = vpack.c.bf16 %v1254, %v1253
      %v1308 = vpack.c.bf16 %v1256, %v1255
      %v1309 = vpack.c.bf16 %v1258, %v1257
      %v1310 = vpack.c.bf16 %v1260, %v1259
      %v1311 = vpack.c.bf16 %v1262, %v1261
      %v1312 = vpack.c.bf16 %v1264, %v1263
      %v1313 = vpack.c.bf16 %v1266, %v1265
      %v1314 = vpack.c.bf16 %v1268, %v1267
      %v1315 = vpack.c.bf16 %v1270, %v1269
      %v1316 = vpack.c.bf16 %v1272, %v1271
      %v1317 = vpack.c.bf16 %v1274, %v1273
      %v1318 = vpack.c.bf16 %v1276, %v1275
      %v1319 = vpack.c.bf16 %v1278, %v1277
      %v1320 = vpack.c.bf16 %v1280, %v1279
      %v1321 = vpack.c.bf16 %v1282, %v1281
      %v1322 = vpack.c.bf16 %v1284, %v1283
      %v1323 = vpack.c.bf16 %v1286, %v1285
      %v1324 = vpack.c.bf16 %v1288, %v1287
      %v1325 = vpack.c.bf16 %v1290, %v1289
      %v1326 = vpack.c.bf16 %v1292, %v1291
      %v1327 = vpack.c.bf16 %v1294, %v1293
      %v1328 = vpack.c.bf16 %v1296, %v1295
      %v1361 = vunpack.c.l.b16 %v1297
      %v1362 = vunpack.c.h.b16 %v1297
      %v1363 = vunpack.c.l.b16 %v1298
      %v1364 = vunpack.c.h.b16 %v1298
      %v1365 = vunpack.c.l.b16 %v1299
      %v1366 = vunpack.c.h.b16 %v1299
      %v1367 = vunpack.c.l.b16 %v1300
      %v1368 = vunpack.c.h.b16 %v1300
      %v1369 = vunpack.c.l.b16 %v1301
      %v1370 = vunpack.c.h.b16 %v1301
      %v1371 = vunpack.c.l.b16 %v1302
      %v1372 = vunpack.c.h.b16 %v1302
      %v1373 = vunpack.c.l.b16 %v1303
      %v1374 = vunpack.c.h.b16 %v1303
      %v1375 = vunpack.c.l.b16 %v1304
      %v1376 = vunpack.c.h.b16 %v1304
      %v1377 = vunpack.c.l.b16 %v1305
      %v1378 = vunpack.c.h.b16 %v1305
      %v1379 = vunpack.c.l.b16 %v1306
      %v1380 = vunpack.c.h.b16 %v1306
      %v1381 = vunpack.c.l.b16 %v1307
      %v1382 = vunpack.c.h.b16 %v1307
      %v1383 = vunpack.c.l.b16 %v1308
      %v1384 = vunpack.c.h.b16 %v1308
      %v1385 = vunpack.c.l.b16 %v1309
      %v1386 = vunpack.c.h.b16 %v1309
      %v1387 = vunpack.c.l.b16 %v1310
      %v1388 = vunpack.c.h.b16 %v1310
      %v1389 = vunpack.c.l.b16 %v1311
      %v1390 = vunpack.c.h.b16 %v1311
      %v1391 = vunpack.c.l.b16 %v1312
      %v1392 = vunpack.c.h.b16 %v1312
      %v1393 = vunpack.c.l.b16 %v1313
      %v1394 = vunpack.c.h.b16 %v1313
      %v1395 = vunpack.c.l.b16 %v1314
      %v1396 = vunpack.c.h.b16 %v1314
      %v1397 = vunpack.c.l.b16 %v1315
      %v1398 = vunpack.c.h.b16 %v1315
      %v1399 = vunpack.c.l.b16 %v1316
      %v1400 = vunpack.c.h.b16 %v1316
      %v1401 = vunpack.c.l.b16 %v1317
      %v1402 = vunpack.c.h.b16 %v1317
      %v1403 = vunpack.c.l.b16 %v1318
      %v1404 = vunpack.c.h.b16 %v1318
      %v1405 = vunpack.c.l.b16 %v1319
      %v1406 = vunpack.c.h.b16 %v1319
      %v1407 = vunpack.c.l.b16 %v1320
      %v1408 = vunpack.c.h.b16 %v1320
      %v1409 = vunpack.c.l.b16 %v1321
      %v1410 = vunpack.c.h.b16 %v1321
      %v1411 = vunpack.c.l.b16 %v1322
      %v1412 = vunpack.c.h.b16 %v1322
      %v1413 = vunpack.c.l.b16 %v1323
      %v1414 = vunpack.c.h.b16 %v1323
      %v1415 = vunpack.c.l.b16 %v1324
      %v1416 = vunpack.c.h.b16 %v1324
      %v1417 = vunpack.c.l.b16 %v1325
      %v1418 = vunpack.c.h.b16 %v1325
      %v1419 = vunpack.c.l.b16 %v1326
      %v1420 = vunpack.c.h.b16 %v1326
      %v1421 = vunpack.c.l.b16 %v1327
      %v1422 = vunpack.c.h.b16 %v1327
      %v1423 = vunpack.c.l.b16 %v1328
      %v1424 = vunpack.c.h.b16 %v1328
      %v1425 = vpack.c.b16 %v1361, %v1361
      %v1426 = vpack.c.b16 %v1362, %v1362
      %v1427 = vpack.c.b16 %v1363, %v1363
      %v1428 = vpack.c.b16 %v1364, %v1364
      %v1429 = vpack.c.b16 %v1365, %v1365
      %v1430 = vpack.c.b16 %v1366, %v1366
      %v1431 = vpack.c.b16 %v1367, %v1367
      %v1432 = vpack.c.b16 %v1368, %v1368
      %v1433 = vpack.c.b16 %v1369, %v1369
      %v1434 = vpack.c.b16 %v1370, %v1370
      %v1435 = vpack.c.b16 %v1371, %v1371
      %v1436 = vpack.c.b16 %v1372, %v1372
      %v1437 = vpack.c.b16 %v1373, %v1373
      %v1438 = vpack.c.b16 %v1374, %v1374
      %v1439 = vpack.c.b16 %v1375, %v1375
      %v1440 = vpack.c.b16 %v1376, %v1376
      %v1441 = vpack.c.b16 %v1377, %v1377
      %v1442 = vpack.c.b16 %v1378, %v1378
      %v1443 = vpack.c.b16 %v1379, %v1379
      %v1444 = vpack.c.b16 %v1380, %v1380
      %v1445 = vpack.c.b16 %v1381, %v1381
      %v1446 = vpack.c.b16 %v1382, %v1382
      %v1447 = vpack.c.b16 %v1383, %v1383
      %v1448 = vpack.c.b16 %v1384, %v1384
      %v1449 = vpack.c.b16 %v1385, %v1385
      %v1450 = vpack.c.b16 %v1386, %v1386
      %v1451 = vpack.c.b16 %v1387, %v1387
      %v1452 = vpack.c.b16 %v1388, %v1388
      %v1453 = vpack.c.b16 %v1389, %v1389
      %v1454 = vpack.c.b16 %v1390, %v1390
      %v1455 = vpack.c.b16 %v1391, %v1391
      %v1456 = vpack.c.b16 %v1392, %v1392
      %v1457 = vpack.c.b16 %v1393, %v1393
      %v1458 = vpack.c.b16 %v1394, %v1394
      %v1459 = vpack.c.b16 %v1395, %v1395
      %v1460 = vpack.c.b16 %v1396, %v1396
      %v1461 = vpack.c.b16 %v1397, %v1397
      %v1462 = vpack.c.b16 %v1398, %v1398
      %v1463 = vpack.c.b16 %v1399, %v1399
      %v1464 = vpack.c.b16 %v1400, %v1400
      %v1465 = vpack.c.b16 %v1401, %v1401
      %v1466 = vpack.c.b16 %v1402, %v1402
      %v1467 = vpack.c.b16 %v1403, %v1403
      %v1468 = vpack.c.b16 %v1404, %v1404
      %v1469 = vpack.c.b16 %v1405, %v1405
      %v1470 = vpack.c.b16 %v1406, %v1406
      %v1471 = vpack.c.b16 %v1407, %v1407
      %v1472 = vpack.c.b16 %v1408, %v1408
      %v1473 = vpack.c.b16 %v1409, %v1409
      %v1474 = vpack.c.b16 %v1410, %v1410
      %v1475 = vpack.c.b16 %v1411, %v1411
      %v1476 = vpack.c.b16 %v1412, %v1412
      %v1477 = vpack.c.b16 %v1413, %v1413
      %v1478 = vpack.c.b16 %v1414, %v1414
      %v1479 = vpack.c.b16 %v1415, %v1415
      %v1480 = vpack.c.b16 %v1416, %v1416
      %v1481 = vpack.c.b16 %v1417, %v1417
      %v1482 = vpack.c.b16 %v1418, %v1418
      %v1483 = vpack.c.b16 %v1419, %v1419
      %v1484 = vpack.c.b16 %v1420, %v1420
      %v1485 = vpack.c.b16 %v1421, %v1421
      %v1486 = vpack.c.b16 %v1422, %v1422
      %v1487 = vpack.c.b16 %v1423, %v1423
      %v1488 = vpack.c.b16 %v1424, %v1424
      %vm1553 = vcmask 519168
      %1554 = vst.msk [vmem:[%s267] sm:$0xf] %vm1553, %v1425
      %1555 = vst.msk [vmem:[%s267 + $0x4] sm:$0xf] %vm1553, %v1426
      %1556 = vst.msk [vmem:[%s267 + $0x8] sm:$0xf] %vm1553, %v1427
      %1557 = vst.msk [vmem:[%s267 + $0xc] sm:$0xf] %vm1553, %v1428
      %1558 = vst.msk [vmem:[%s267 + $0x10] sm:$0xf] %vm1553, %v1429
      %1559 = vst.msk [vmem:[%s267 + $0x14] sm:$0xf] %vm1553, %v1430
      %1560 = vst.msk [vmem:[%s267 + $0x18] sm:$0xf] %vm1553, %v1431
      %1561 = vst.msk [vmem:[%s267 + $0x1c] sm:$0xf] %vm1553, %v1432
      %1562 = vst.msk [vmem:[%s267 + $0x20] sm:$0xf] %vm1553, %v1433
      %1563 = vst.msk [vmem:[%s267 + $0x24] sm:$0xf] %vm1553, %v1434
      %1564 = vst.msk [vmem:[%s267 + $0x28] sm:$0xf] %vm1553, %v1435
      %1565 = vst.msk [vmem:[%s267 + $0x2c] sm:$0xf] %vm1553, %v1436
      %1566 = vst.msk [vmem:[%s267 + $0x30] sm:$0xf] %vm1553, %v1437
      %1567 = vst.msk [vmem:[%s267 + $0x34] sm:$0xf] %vm1553, %v1438
      %1568 = vst.msk [vmem:[%s267 + $0x38] sm:$0xf] %vm1553, %v1439
      %1569 = vst.msk [vmem:[%s267 + $0x3c] sm:$0xf] %vm1553, %v1440
      %1570 = vst.msk [vmem:[%s267 + $0x40] sm:$0xf] %vm1553, %v1441
      %1571 = vst.msk [vmem:[%s267 + $0x44] sm:$0xf] %vm1553, %v1442
      %1572 = vst.msk [vmem:[%s267 + $0x48] sm:$0xf] %vm1553, %v1443
      %1573 = vst.msk [vmem:[%s267 + $0x4c] sm:$0xf] %vm1553, %v1444
      %1574 = vst.msk [vmem:[%s267 + $0x50] sm:$0xf] %vm1553, %v1445
      %1575 = vst.msk [vmem:[%s267 + $0x54] sm:$0xf] %vm1553, %v1446
      %1576 = vst.msk [vmem:[%s267 + $0x58] sm:$0xf] %vm1553, %v1447
      %1577 = vst.msk [vmem:[%s267 + $0x5c] sm:$0xf] %vm1553, %v1448
      %1578 = vst.msk [vmem:[%s267 + $0x60] sm:$0xf] %vm1553, %v1449
      %1579 = vst.msk [vmem:[%s267 + $0x64] sm:$0xf] %vm1553, %v1450
      %1580 = vst.msk [vmem:[%s267 + $0x68] sm:$0xf] %vm1553, %v1451
      %1581 = vst.msk [vmem:[%s267 + $0x6c] sm:$0xf] %vm1553, %v1452
      %1582 = vst.msk [vmem:[%s267 + $0x70] sm:$0xf] %vm1553, %v1453
      %1583 = vst.msk [vmem:[%s267 + $0x74] sm:$0xf] %vm1553, %v1454
      %1584 = vst.msk [vmem:[%s267 + $0x78] sm:$0xf] %vm1553, %v1455
      %1585 = vst.msk [vmem:[%s267 + $0x7c] sm:$0xf] %vm1553, %v1456
      %1586 = vst.msk [vmem:[%s267 + $0x80] sm:$0xf] %vm1553, %v1457
      %1587 = vst.msk [vmem:[%s267 + $0x84] sm:$0xf] %vm1553, %v1458
      %1588 = vst.msk [vmem:[%s267 + $0x88] sm:$0xf] %vm1553, %v1459
      %1589 = vst.msk [vmem:[%s267 + $0x8c] sm:$0xf] %vm1553, %v1460
      %1590 = vst.msk [vmem:[%s267 + $0x90] sm:$0xf] %vm1553, %v1461
      %1591 = vst.msk [vmem:[%s267 + $0x94] sm:$0xf] %vm1553, %v1462
      %1592 = vst.msk [vmem:[%s267 + $0x98] sm:$0xf] %vm1553, %v1463
      %1593 = vst.msk [vmem:[%s267 + $0x9c] sm:$0xf] %vm1553, %v1464
      %1594 = vst.msk [vmem:[%s267 + $0xa0] sm:$0xf] %vm1553, %v1465
      %1595 = vst.msk [vmem:[%s267 + $0xa4] sm:$0xf] %vm1553, %v1466
      %1596 = vst.msk [vmem:[%s267 + $0xa8] sm:$0xf] %vm1553, %v1467
      %1597 = vst.msk [vmem:[%s267 + $0xac] sm:$0xf] %vm1553, %v1468
      %1598 = vst.msk [vmem:[%s267 + $0xb0] sm:$0xf] %vm1553, %v1469
      %1599 = vst.msk [vmem:[%s267 + $0xb4] sm:$0xf] %vm1553, %v1470
      %1600 = vst.msk [vmem:[%s267 + $0xb8] sm:$0xf] %vm1553, %v1471
      %1601 = vst.msk [vmem:[%s267 + $0xbc] sm:$0xf] %vm1553, %v1472
      %1602 = vst.msk [vmem:[%s267 + $0xc0] sm:$0xf] %vm1553, %v1473
      %1603 = vst.msk [vmem:[%s267 + $0xc4] sm:$0xf] %vm1553, %v1474
      %1604 = vst.msk [vmem:[%s267 + $0xc8] sm:$0xf] %vm1553, %v1475
      %1605 = vst.msk [vmem:[%s267 + $0xcc] sm:$0xf] %vm1553, %v1476
      %1606 = vst.msk [vmem:[%s267 + $0xd0] sm:$0xf] %vm1553, %v1477
      %1607 = vst.msk [vmem:[%s267 + $0xd4] sm:$0xf] %vm1553, %v1478
      %1608 = vst.msk [vmem:[%s267 + $0xd8] sm:$0xf] %vm1553, %v1479
      %1609 = vst.msk [vmem:[%s267 + $0xdc] sm:$0xf] %vm1553, %v1480
      %1610 = vst.msk [vmem:[%s267 + $0xe0] sm:$0xf] %vm1553, %v1481
      %1611 = vst.msk [vmem:[%s267 + $0xe4] sm:$0xf] %vm1553, %v1482
      %1612 = vst.msk [vmem:[%s267 + $0xe8] sm:$0xf] %vm1553, %v1483
      %1613 = vst.msk [vmem:[%s267 + $0xec] sm:$0xf] %vm1553, %v1484
      %1614 = vst.msk [vmem:[%s267 + $0xf0] sm:$0xf] %vm1553, %v1485
      %1615 = vst.msk [vmem:[%s267 + $0xf4] sm:$0xf] %vm1553, %v1486
      %1616 = vst.msk [vmem:[%s267 + $0xf8] sm:$0xf] %vm1553, %v1487
      %1617 = vst.msk [vmem:[%s267 + $0xfc] sm:$0xf] %vm1553, %v1488
      %s1618 = smul.u32 64, %s19
      %p1619 = scmp.lt.s32.totalorder %s1618, 255
      %s1620 = scalar_select %p1619, %s1618, 255
      %p1621 = scmp.lt.s32.totalorder %s20, 0
      %s1622 = scalar_select %p1621, %s20, 0
      %s1623 = sadd.s32 %s1622, %s1620
      %s1624 = smul.addr %s1623, 4
      %s1625 = scalar_lea.vmem %s4, %s1624
      // Predicated region
      $region37: #{tpu_custom_call.1} parent=35 // pred_check
        %p1626 = pneg %p151
      $region38: #{tpu_custom_call.1} parent=35 // pred_check_branch
        %1628 = sbr.rel (%p1626) target = $region40
      $region39: #{tpu_custom_call.1} parent=35 // pred_region
        %s1629 = smul.u32 64, %s19
      $region40: #{tpu_custom_call.1} parent=35 // pred_fallthru
        _
    $region36: #{tpu_custom_call.1} parent=5 // pred_fallthru
      _
    %p1630 = scmp.le.s32.totalorder 2, %s10
    // Predicated region
    $region41: #{tpu_custom_call.1} parent=5 // pred_check
      %p1631 = pneg %p1630
    $region42: #{tpu_custom_call.1} parent=5 // pred_check_branch
      %1633 = sbr.rel (%p1631) target = $region44
    $region43: #{tpu_custom_call.1} parent=5 // pred_region
      %s1634 = ssub.s32 %s10, 2
      // Predicated region
      $region45: #{tpu_custom_call.1} parent=43 // pred_check
        %p1635 = pneg %p157
      $region46: #{tpu_custom_call.1} parent=43 // pred_check_branch
        %1637 = sbr.rel (%p1635) target = $region48
      $region47: #{tpu_custom_call.1} parent=43 // pred_region
        %s1638 = smul.u32 64, %s21
        %p1639 = scmp.lt.s32.totalorder %s1638, 255
        %s1640 = scalar_select %p1639, %s1638, 255
        %p1641 = scmp.lt.s32.totalorder %s22, 0
        %s1642 = scalar_select %p1641, %s22, 0
        %s1643 = sadd.s32 %s1642, %s1640
        %s1644 = smul.addr %s1643, 4
        %s1645 = scalar_lea.vmem %s4, %s1644
      $region48: #{tpu_custom_call.1} parent=43 // pred_fallthru
        _
    $region44: #{tpu_custom_call.1} parent=5 // pred_fallthru
      _
  $region6: #{tpu_custom_call.1} parent=0 // loop_footer
    %s14 = sadd.s32 1, %s10
  $region7: #{tpu_custom_call.1} parent=0 // loop_footer_branch
    %9 = sbr.rel target = $region3
  $region8: #{tpu_custom_call.1} parent=0 // loop_exit
    _

</llo_original>
